<compile_context>
chip_gen: v7x
topology: tpu7x:2x2x1
jax: 0.10.0
libtpu: 0.0.40
codegen_flags: <defaults>
</compile_context>

<pallas_src>
import functools

import jax
import jax.numpy as jnp
from jax.experimental import pallas as pl
from jax.experimental.pallas import tpu as pltpu


# --------------------------------------------------------------------------
# Fused kernel
# --------------------------------------------------------------------------
def fused_policy_kernel(inv_ref, seg_ref, board_ref, a1_ref, a2_ref,
                        w1a_ref, w1bt_ref, w1bb_ref, b1_ref,
                        w2_ref, b2_ref,
                        w3_ref, b3_ref,
                        wh1_ref, bh1_ref,
                        wh2_ref, bh2_ref,
                        o_ref, *, n_seg):
    f32 = jnp.float32
    bf16 = jnp.bfloat16

    # per-input-tensor global-sum normalization: inverse sums come in via SMEM
    # (computed over the FULL tensors, so batch tiling stays exact).
    inv_board = inv_ref[0]
    inv_a1 = inv_ref[1]
    inv_a2 = inv_ref[2]

    # ---- trunk: Linear(in,256)+ReLU -> Linear(256,128)+ReLU -> Linear(128,128)
    # All matmuls bf16 on the MXU with f32 accumulation; normalization applied
    # as a scalar scale on the f32 accumulators (>= accuracy of pre-dividing).
    h = jnp.dot(board_ref[...].astype(bf16), w1a_ref[...],
                preferred_element_type=f32) * inv_board
    h = h + jnp.dot(a1_ref[...].astype(bf16), w1bt_ref[...],
                    preferred_element_type=f32) * inv_a1
    h = h + jnp.dot(a2_ref[...].astype(bf16), w1bb_ref[...],
                    preferred_element_type=f32) * inv_a2
    h = jnp.maximum(h + b1_ref[...], 0.0)
    h = jnp.maximum(
        jnp.dot(h.astype(bf16), w2_ref[...], preferred_element_type=f32)
        + b2_ref[...], 0.0)
    out_fc = (jnp.dot(h.astype(bf16), w3_ref[...], preferred_element_type=f32)
              + b3_ref[...])

    # ---- heads layer 1: all 2*S heads batched into one (128 -> 2*S*128) matmul
    z = jnp.maximum(out_fc, 0.0)
    hh = jnp.maximum(
        jnp.dot(z.astype(bf16), wh1_ref[...], preferred_element_type=f32)
        + bh1_ref[...], 0.0)

    # ---- heads layer 2: block-diagonal (2*S*128 -> 128) matmul -> one
    # lane-dense logits slab holding every head's logits side by side.
    logits = (jnp.dot(hh.astype(bf16), wh2_ref[...], preferred_element_type=f32)
              + bh2_ref[...])

    # ---- segmented softmax, all full-width (no narrow slices / concats).
    seg_ids = seg_ref[...]                       # (1, 128) int32, pad lanes = -1
    neg = jnp.float32(-1e30)
    masks = [seg_ids == s for s in range(n_seg)]  # (1, 128) bool each

    # per-segment max, broadcast back to the segment's lanes
    m_full = jnp.zeros_like(logits)
    for mask in masks:
        seg_max = jnp.max(jnp.where(mask, logits, neg), axis=-1, keepdims=True)
        m_full = jnp.where(mask, seg_max, m_full)

    e = jnp.exp(logits - m_full)                 # pad lanes: exp(0-0)=1, masked below

    # per-segment sum, broadcast back; pad lanes keep denom 1 (no NaN/Inf)
    s_full = jnp.ones_like(logits)
    for mask in masks:
        seg_sum = jnp.sum(jnp.where(mask, e, 0.0), axis=-1, keepdims=True)
        s_full = jnp.where(mask, seg_sum, s_full)

    probs = e * pl.reciprocal(s_full, approx=False)   # exact simplex per head
    o_ref[...] = jnp.where(seg_ids >= 0, probs, 0.0)  # zero the pad lanes, one dense store


# --------------------------------------------------------------------------
# Wrappers
# --------------------------------------------------------------------------
def _vmem_full(shape):
    nd = len(shape)
    return pl.BlockSpec(shape, lambda i, _nd=nd: (0,) * _nd,
                        memory_space=pltpu.MemorySpace.VMEM)


def _vmem_batch(tb, width):
    return pl.BlockSpec((tb, width), lambda i: (i, 0),
                        memory_space=pltpu.MemorySpace.VMEM)


@functools.partial(jax.jit, static_argnames=("out_pad", "n_seg"))
def run_fused(board_flat, aux1, aux2, fused, *, out_pad, n_seg):
    B, HW = board_flat.shape
    S = aux1.shape[1]

    # global sums over the FULL tensors (matches PyTorch: sum includes batch).
    inv_sums = 1.0 / jnp.stack(
        [jnp.sum(board_flat), jnp.sum(aux1), jnp.sum(aux2)]).astype(jnp.float32)

    # batch tile: sublane-aligned, capped at 512 rows per grid step.
    tb = min(512, 8 * ((B + 7) // 8))
    bp = tb * ((B + tb - 1) // tb)
    if bp != B:
        pad = bp - B
        board_flat = jnp.pad(board_flat, ((0, pad), (0, 0)))
        aux1 = jnp.pad(aux1, ((0, pad), (0, 0)))
        aux2 = jnp.pad(aux2, ((0, pad), (0, 0)))

    kernel = functools.partial(fused_policy_kernel, n_seg=n_seg)
    slab = pl.pallas_call(
        kernel,
        out_shape=jax.ShapeDtypeStruct((bp, out_pad), jnp.float32),
        grid_spec=pltpu.PrefetchScalarGridSpec(
            num_scalar_prefetch=0,
            grid=(bp // tb,),
            in_specs=[
                pl.BlockSpec(memory_space=pltpu.MemorySpace.SMEM),   # inv sums
                _vmem_full(fused["seg"].shape),                      # segment ids
                _vmem_batch(tb, HW),                                 # board
                _vmem_batch(tb, S),                                  # aux1
                _vmem_batch(tb, S),                                  # aux2
                _vmem_full(fused["w1a"].shape), _vmem_full(fused["w1bt"].shape),
                _vmem_full(fused["w1bb"].shape), _vmem_full(fused["b1"].shape),
                _vmem_full(fused["w2"].shape), _vmem_full(fused["b2"].shape),
                _vmem_full(fused["w3"].shape), _vmem_full(fused["b3"].shape),
                _vmem_full(fused["wh1"].shape), _vmem_full(fused["bh1"].shape),
                _vmem_full(fused["wh2"].shape), _vmem_full(fused["bh2"].shape),
            ],
            out_specs=_vmem_batch(tb, out_pad),
        ),
        compiler_params=pltpu.CompilerParams(
            dimension_semantics=("parallel",)),   # shards batch tiles on v7x's 2 TCs
    )(inv_sums, fused["seg"], board_flat, aux1, aux2,
      fused["w1a"], fused["w1bt"], fused["w1bb"], fused["b1"],
      fused["w2"], fused["b2"], fused["w3"], fused["b3"],
      fused["wh1"], fused["bh1"], fused["wh2"], fused["bh2"])
    return slab[:B]


def prepare_fused_params(params, input_shape, num_subtasks):
    """One-time host-side packing of the per-head weights into fused layouts."""
    S = num_subtasks
    Hd = input_shape[0]
    HW = input_shape[0] * input_shape[1]
    bf16 = jnp.bfloat16

    head_dims = tuple([Hd] * S + [S] * S)
    total = sum(head_dims)
    out_pad = int(128 * pl.cdiv(total, 128))      # lane-dense output width

    w1 = params["fc_w1"]                          # (HW + 2S, 256)
    w1a = w1[:HW]
    w1bt = w1[HW:HW + S]                          # aux1 rows
    w1bb = w1[HW + S:]                            # aux2 rows

    # head layer 1: concat every head's (128,128) along the output axis.
    wh1 = jnp.concatenate([params["pol_w1"][i] for i in range(S)]
                          + [params["pri_w1"][i] for i in range(S)], axis=1)
    bh1 = jnp.concatenate([params["pol_b1"][i] for i in range(S)]
                          + [params["pri_b1"][i] for i in range(S)], axis=1)

    # head layer 2: block-diagonal projection onto one lane-dense slab.
    w2s = ([params["pol_w2"][i] for i in range(S)]
           + [params["pri_w2"][i] for i in range(S)])
    b2s = ([params["pol_b2"][i] for i in range(S)]
           + [params["pri_b2"][i] for i in range(S)])
    wh2 = jnp.zeros((2 * S * 128, out_pad), jnp.float32)
    bh2 = jnp.zeros((1, out_pad), jnp.float32)
    col = 0
    for i, (w2i, b2i, wd) in enumerate(zip(w2s, b2s, head_dims)):
        wh2 = wh2.at[i * 128:(i + 1) * 128, col:col + wd].set(w2i)
        bh2 = bh2.at[:, col:col + wd].set(b2i)
        col += wd

    # per-lane segment id (pad lanes = -1) driving the in-kernel segmented softmax
    seg = jnp.concatenate(
        [jnp.full((w,), s, jnp.int32) for s, w in enumerate(head_dims)]
        + [jnp.full((out_pad - total,), -1, jnp.int32)]).reshape(1, out_pad)

    fused = {
        "seg": seg,
        "w1a": w1a.astype(bf16),
        "w1bt": w1bt.astype(bf16), "w1bb": w1bb.astype(bf16),
        "b1": params["fc_b1"],
        "w2": params["fc_w2"].astype(bf16), "b2": params["fc_b2"],
        "w3": params["fc_w3"].astype(bf16), "b3": params["fc_b3"],
        "wh1": wh1.astype(bf16), "bh1": bh1,
        "wh2": wh2.astype(bf16), "bh2": bh2,
    }
    return fused, head_dims, out_pad


def policy_net_fc_forward(xs, fused, head_dims, out_pad):
    """xs = (board (B,H,W), aux1 (B,S), aux2 (B,S)) -> ([policy_i], [prior_i])."""
    board, a1, a2 = xs
    B = board.shape[0]
    board_flat = board.reshape(B, -1).astype(jnp.float32)
    slab = run_fused(board_flat, a1.astype(jnp.float32), a2.astype(jnp.float32),
                     fused, out_pad=out_pad, n_seg=len(head_dims))
    # Layout plumbing only: slice the lane-dense slab back into per-head lists
    # to match the PyTorch API. Latency-sensitive callers can use `slab` as-is.
    S = len(head_dims) // 2
    outs, col = [], 0
    for w in head_dims:
        outs.append(slab[:, col:col + w])
        col += w
    return outs[:S], outs[S:]


# --------------------------------------------------------------------------
# Parameter construction (deterministic, std=0.02 weights, zero biases)
# --------------------------------------------------------------------------
def make_params(key, input_shape, num_subtasks):
    H, W = input_shape
    D = H * W + 2 * num_subtasks
    S = num_subtasks
    ks = jax.random.split(key, 8)
    std = 0.02
    return {
        "fc_w1": std * jax.random.normal(ks[0], (D, 256), jnp.float32),
        "fc_b1": jnp.zeros((1, 256), jnp.float32),
        "fc_w2": std * jax.random.normal(ks[1], (256, 128), jnp.float32),
        "fc_b2": jnp.zeros((1, 128), jnp.float32),
        "fc_w3": std * jax.random.normal(ks[2], (128, 128), jnp.float32),
        "fc_b3": jnp.zeros((1, 128), jnp.float32),
        # stacked per-subtask heads
        "pol_w1": std * jax.random.normal(ks[3], (S, 128, 128), jnp.float32),
        "pol_b1": jnp.zeros((S, 1, 128), jnp.float32),
        "pol_w2": std * jax.random.normal(ks[4], (S, 128, H), jnp.float32),
        "pol_b2": jnp.zeros((S, 1, H), jnp.float32),
        "pri_w1": std * jax.random.normal(ks[5], (S, 128, 128), jnp.float32),
        "pri_b1": jnp.zeros((S, 1, 128), jnp.float32),
        "pri_w2": std * jax.random.normal(ks[6], (S, 128, S), jnp.float32),
        "pri_b2": jnp.zeros((S, 1, S), jnp.float32),
    }


# --------------------------------------------------------------------------
# Pure-JAX (f32) reference for validation
# --------------------------------------------------------------------------
def ref_forward(xs, params):
    B = xs[0].shape[0]
    x = jnp.concatenate([(t / jnp.sum(t)).reshape(B, -1) for t in xs], axis=1)
    h = jnp.maximum(x @ params["fc_w1"] + params["fc_b1"], 0.0)
    h = jnp.maximum(h @ params["fc_w2"] + params["fc_b2"], 0.0)
    out_fc = h @ params["fc_w3"] + params["fc_b3"]

    def head(w1, b1, w2, b2):
        z = jnp.maximum(out_fc, 0.0)
        z = jnp.maximum(z @ w1 + b1, 0.0)
        return jax.nn.softmax(z @ w2 + b2, axis=1)

    S = params["pol_w1"].shape[0]
    l1 = [head(params["pol_w1"][i], params["pol_b1"][i],
               params["pol_w2"][i], params["pol_b2"][i]) for i in range(S)]
    l2 = [head(params["pri_w1"][i], params["pri_b1"][i],
               params["pri_w2"][i], params["pri_b2"][i]) for i in range(S)]
    return l1, l2


# --------------------------------------------------------------------------
if __name__ == "__main__":
    B = 2
    input_shape = (16, 16)      # (H, W)
    num_subtasks = 4

    key = jax.random.PRNGKey(0)
    k_params, k0, k1, k2 = jax.random.split(key, 4)
    params = make_params(k_params, input_shape, num_subtasks)
    fused, head_dims, out_pad = prepare_fused_params(params, input_shape,
                                                     num_subtasks)

    # positive inputs so the global-sum normalization is well defined
    board = jax.random.uniform(k0, (B, *input_shape), jnp.float32) + 0.1
    aux1 = jax.random.uniform(k1, (B, num_subtasks), jnp.float32) + 0.1
    aux2 = jax.random.uniform(k2, (B, num_subtasks), jnp.float32) + 0.1
    xs = (board, aux1, aux2)

    l1, l2 = policy_net_fc_forward(xs, fused, head_dims, out_pad)
    jax.block_until_ready(l1)
    jax.block_until_ready(l2)

    r1, r2 = ref_forward(xs, params)
    for a, b in zip(l1 + l2, r1 + r2):
        assert a.shape == b.shape
        # exact (approx=False) reciprocal -> each head is a tight simplex
        assert jnp.allclose(jnp.sum(a, axis=1), 1.0, atol=1e-5)
        # bf16 matmuls vs f32 reference: ~1e-2 accuracy budget
        assert jnp.allclose(a, b, atol=1e-2, rtol=1e-2)

    print("KERNEL_OK")
</pallas_src>

<mosaic_0001>
module attributes {stable_mosaic.version = 11 : i64} {
  func.func @fused_policy_kernel(%arg0: i32, %arg1: memref<3xf32, #tpu.memory_space<smem>>, %arg2: memref<1x128xi32, #tpu.memory_space<vmem>>, %arg3: memref<8x256xf32, #tpu.memory_space<vmem>>, %arg4: memref<8x4xf32, #tpu.memory_space<vmem>>, %arg5: memref<8x4xf32, #tpu.memory_space<vmem>>, %arg6: memref<256x256xbf16, #tpu.memory_space<vmem>>, %arg7: memref<4x256xbf16, #tpu.memory_space<vmem>>, %arg8: memref<4x256xbf16, #tpu.memory_space<vmem>>, %arg9: memref<1x256xf32, #tpu.memory_space<vmem>>, %arg10: memref<256x128xbf16, #tpu.memory_space<vmem>>, %arg11: memref<1x128xf32, #tpu.memory_space<vmem>>, %arg12: memref<128x128xbf16, #tpu.memory_space<vmem>>, %arg13: memref<1x128xf32, #tpu.memory_space<vmem>>, %arg14: memref<128x1024xbf16, #tpu.memory_space<vmem>>, %arg15: memref<1x1024xf32, #tpu.memory_space<vmem>>, %arg16: memref<1024x128xbf16, #tpu.memory_space<vmem>>, %arg17: memref<1x128xf32, #tpu.memory_space<vmem>>, %arg18: memref<8x128xf32, #tpu.memory_space<vmem>>) attributes {dimension_semantics = [#tpu.dimension_semantics<parallel>], iteration_bounds = array<i64: 1>, scalar_prefetch = 0 : i64, scratch_operands = 0 : i64, tpu.core_type = #tpu.core_type<tc>, window_params = [{transform_indices = @transform_0, window_bounds = array<i64: 3>}, {pipeline_mode = #tpu.pipeline_mode<synchronous>, transform_indices = @transform_1, window_bounds = array<i64: 1, 128>}, {transform_indices = @transform_2, window_bounds = array<i64: 8, 256>}, {transform_indices = @transform_3, window_bounds = array<i64: 8, 4>}, {transform_indices = @transform_4, window_bounds = array<i64: 8, 4>}, {pipeline_mode = #tpu.pipeline_mode<synchronous>, transform_indices = @transform_5, window_bounds = array<i64: 256, 256>}, {pipeline_mode = #tpu.pipeline_mode<synchronous>, transform_indices = @transform_6, window_bounds = array<i64: 4, 256>}, {pipeline_mode = #tpu.pipeline_mode<synchronous>, transform_indices = @transform_7, window_bounds = array<i64: 4, 256>}, {pipeline_mode = #tpu.pipeline_mode<synchronous>, transform_indices = @transform_8, window_bounds = array<i64: 1, 256>}, {pipeline_mode = #tpu.pipeline_mode<synchronous>, transform_indices = @transform_9, window_bounds = array<i64: 256, 128>}, {pipeline_mode = #tpu.pipeline_mode<synchronous>, transform_indices = @transform_10, window_bounds = array<i64: 1, 128>}, {pipeline_mode = #tpu.pipeline_mode<synchronous>, transform_indices = @transform_11, window_bounds = array<i64: 128, 128>}, {pipeline_mode = #tpu.pipeline_mode<synchronous>, transform_indices = @transform_12, window_bounds = array<i64: 1, 128>}, {pipeline_mode = #tpu.pipeline_mode<synchronous>, transform_indices = @transform_13, window_bounds = array<i64: 128, 1024>}, {pipeline_mode = #tpu.pipeline_mode<synchronous>, transform_indices = @transform_14, window_bounds = array<i64: 1, 1024>}, {pipeline_mode = #tpu.pipeline_mode<synchronous>, transform_indices = @transform_15, window_bounds = array<i64: 1024, 128>}, {pipeline_mode = #tpu.pipeline_mode<synchronous>, transform_indices = @transform_16, window_bounds = array<i64: 1, 128>}, {transform_indices = @transform_17, window_bounds = array<i64: 8, 128>}]} {
    %c0 = arith.constant 0 : index
    %0 = memref.load %arg1[%c0] : memref<3xf32, #tpu.memory_space<smem>>
    %c1 = arith.constant 1 : index
    %1 = memref.load %arg1[%c1] : memref<3xf32, #tpu.memory_space<smem>>
    %c2 = arith.constant 2 : index
    %2 = memref.load %arg1[%c2] : memref<3xf32, #tpu.memory_space<smem>>
    %c0_0 = arith.constant 0 : index
    %c0_1 = arith.constant 0 : index
    %3 = vector.load %arg3[%c0_0, %c0_1] : memref<8x256xf32, #tpu.memory_space<vmem>>, vector<8x256xf32>
    %4 = arith.truncf %3 : vector<8x256xf32> to vector<8x256xbf16>
    %c0_2 = arith.constant 0 : index
    %c0_3 = arith.constant 0 : index
    %5 = vector.load %arg6[%c0_2, %c0_3] : memref<256x256xbf16, #tpu.memory_space<vmem>>, vector<256x256xbf16>
    %cst = arith.constant dense<0.000000e+00> : vector<8x256xf32>
    %6 = tpu.matmul %4, %5, %cst {dimension_numbers = #tpu.dot_dimension_numbers<[1], [0], [0], [1], [0, 0, 1, 1], [], []>} : vector<8x256xbf16>, vector<256x256xbf16>, vector<8x256xf32> -> vector<8x256xf32>
    %7 = vector.broadcast %0 : f32 to vector<8x256xf32>
    %8 = arith.mulf %6, %7 : vector<8x256xf32>
    %c0_4 = arith.constant 0 : index
    %c0_5 = arith.constant 0 : index
    %9 = vector.load %arg4[%c0_4, %c0_5] : memref<8x4xf32, #tpu.memory_space<vmem>>, vector<8x4xf32>
    %10 = arith.truncf %9 : vector<8x4xf32> to vector<8x4xbf16>
    %c0_6 = arith.constant 0 : index
    %c0_7 = arith.constant 0 : index
    %11 = vector.load %arg7[%c0_6, %c0_7] : memref<4x256xbf16, #tpu.memory_space<vmem>>, vector<4x256xbf16>
    %cst_8 = arith.constant dense<0.000000e+00> : vector<8x256xf32>
    %12 = tpu.matmul %10, %11, %cst_8 {dimension_numbers = #tpu.dot_dimension_numbers<[1], [0], [0], [1], [0, 0, 1, 1], [], []>} : vector<8x4xbf16>, vector<4x256xbf16>, vector<8x256xf32> -> vector<8x256xf32>
    %13 = vector.broadcast %1 : f32 to vector<8x256xf32>
    %14 = arith.mulf %12, %13 : vector<8x256xf32>
    %15 = arith.addf %8, %14 : vector<8x256xf32>
    %c0_9 = arith.constant 0 : index
    %c0_10 = arith.constant 0 : index
    %16 = vector.load %arg5[%c0_9, %c0_10] : memref<8x4xf32, #tpu.memory_space<vmem>>, vector<8x4xf32>
    %17 = arith.truncf %16 : vector<8x4xf32> to vector<8x4xbf16>
    %c0_11 = arith.constant 0 : index
    %c0_12 = arith.constant 0 : index
    %18 = vector.load %arg8[%c0_11, %c0_12] : memref<4x256xbf16, #tpu.memory_space<vmem>>, vector<4x256xbf16>
    %cst_13 = arith.constant dense<0.000000e+00> : vector<8x256xf32>
    %19 = tpu.matmul %17, %18, %cst_13 {dimension_numbers = #tpu.dot_dimension_numbers<[1], [0], [0], [1], [0, 0, 1, 1], [], []>} : vector<8x4xbf16>, vector<4x256xbf16>, vector<8x256xf32> -> vector<8x256xf32>
    %20 = vector.broadcast %2 : f32 to vector<8x256xf32>
    %21 = arith.mulf %19, %20 : vector<8x256xf32>
    %22 = arith.addf %15, %21 : vector<8x256xf32>
    %c0_14 = arith.constant 0 : index
    %c0_15 = arith.constant 0 : index
    %23 = vector.load %arg9[%c0_14, %c0_15] : memref<1x256xf32, #tpu.memory_space<vmem>>, vector<1x256xf32>
    %24 = vector.broadcast %23 : vector<1x256xf32> to vector<8x256xf32>
    %25 = arith.addf %22, %24 : vector<8x256xf32>
    %cst_16 = arith.constant 0.000000e+00 : f32
    %26 = vector.broadcast %cst_16 : f32 to vector<8x256xf32>
    %27 = arith.maximumf %25, %26 : vector<8x256xf32>
    %28 = arith.truncf %27 : vector<8x256xf32> to vector<8x256xbf16>
    %c0_17 = arith.constant 0 : index
    %c0_18 = arith.constant 0 : index
    %29 = vector.load %arg10[%c0_17, %c0_18] : memref<256x128xbf16, #tpu.memory_space<vmem>>, vector<256x128xbf16>
    %cst_19 = arith.constant dense<0.000000e+00> : vector<8x128xf32>
    %30 = tpu.matmul %28, %29, %cst_19 {dimension_numbers = #tpu.dot_dimension_numbers<[1], [0], [0], [1], [0, 0, 1, 1], [], []>} : vector<8x256xbf16>, vector<256x128xbf16>, vector<8x128xf32> -> vector<8x128xf32>
    %c0_20 = arith.constant 0 : index
    %c0_21 = arith.constant 0 : index
    %31 = vector.load %arg11[%c0_20, %c0_21] : memref<1x128xf32, #tpu.memory_space<vmem>>, vector<1x128xf32>
    %32 = vector.broadcast %31 : vector<1x128xf32> to vector<8x128xf32>
    %33 = arith.addf %30, %32 : vector<8x128xf32>
    %cst_22 = arith.constant 0.000000e+00 : f32
    %34 = vector.broadcast %cst_22 : f32 to vector<8x128xf32>
    %35 = arith.maximumf %33, %34 : vector<8x128xf32>
    %36 = arith.truncf %35 : vector<8x128xf32> to vector<8x128xbf16>
    %c0_23 = arith.constant 0 : index
    %c0_24 = arith.constant 0 : index
    %37 = vector.load %arg12[%c0_23, %c0_24] : memref<128x128xbf16, #tpu.memory_space<vmem>>, vector<128x128xbf16>
    %cst_25 = arith.constant dense<0.000000e+00> : vector<8x128xf32>
    %38 = tpu.matmul %36, %37, %cst_25 {dimension_numbers = #tpu.dot_dimension_numbers<[1], [0], [0], [1], [0, 0, 1, 1], [], []>} : vector<8x128xbf16>, vector<128x128xbf16>, vector<8x128xf32> -> vector<8x128xf32>
    %c0_26 = arith.constant 0 : index
    %c0_27 = arith.constant 0 : index
    %39 = vector.load %arg13[%c0_26, %c0_27] : memref<1x128xf32, #tpu.memory_space<vmem>>, vector<1x128xf32>
    %40 = vector.broadcast %39 : vector<1x128xf32> to vector<8x128xf32>
    %41 = arith.addf %38, %40 : vector<8x128xf32>
    %cst_28 = arith.constant 0.000000e+00 : f32
    %42 = vector.broadcast %cst_28 : f32 to vector<8x128xf32>
    %43 = arith.maximumf %41, %42 : vector<8x128xf32>
    %44 = arith.truncf %43 : vector<8x128xf32> to vector<8x128xbf16>
    %c0_29 = arith.constant 0 : index
    %c0_30 = arith.constant 0 : index
    %45 = vector.load %arg14[%c0_29, %c0_30] : memref<128x1024xbf16, #tpu.memory_space<vmem>>, vector<128x1024xbf16>
    %cst_31 = arith.constant dense<0.000000e+00> : vector<8x1024xf32>
    %46 = tpu.matmul %44, %45, %cst_31 {dimension_numbers = #tpu.dot_dimension_numbers<[1], [0], [0], [1], [0, 0, 1, 1], [], []>} : vector<8x128xbf16>, vector<128x1024xbf16>, vector<8x1024xf32> -> vector<8x1024xf32>
    %c0_32 = arith.constant 0 : index
    %c0_33 = arith.constant 0 : index
    %47 = vector.load %arg15[%c0_32, %c0_33] : memref<1x1024xf32, #tpu.memory_space<vmem>>, vector<1x1024xf32>
    %48 = vector.broadcast %47 : vector<1x1024xf32> to vector<8x1024xf32>
    %49 = arith.addf %46, %48 : vector<8x1024xf32>
    %cst_34 = arith.constant 0.000000e+00 : f32
    %50 = vector.broadcast %cst_34 : f32 to vector<8x1024xf32>
    %51 = arith.maximumf %49, %50 : vector<8x1024xf32>
    %52 = arith.truncf %51 : vector<8x1024xf32> to vector<8x1024xbf16>
    %c0_35 = arith.constant 0 : index
    %c0_36 = arith.constant 0 : index
    %53 = vector.load %arg16[%c0_35, %c0_36] : memref<1024x128xbf16, #tpu.memory_space<vmem>>, vector<1024x128xbf16>
    %cst_37 = arith.constant dense<0.000000e+00> : vector<8x128xf32>
    %54 = tpu.matmul %52, %53, %cst_37 {dimension_numbers = #tpu.dot_dimension_numbers<[1], [0], [0], [1], [0, 0, 1, 1], [], []>} : vector<8x1024xbf16>, vector<1024x128xbf16>, vector<8x128xf32> -> vector<8x128xf32>
    %c0_38 = arith.constant 0 : index
    %c0_39 = arith.constant 0 : index
    %55 = vector.load %arg17[%c0_38, %c0_39] : memref<1x128xf32, #tpu.memory_space<vmem>>, vector<1x128xf32>
    %56 = vector.broadcast %55 : vector<1x128xf32> to vector<8x128xf32>
    %57 = arith.addf %54, %56 : vector<8x128xf32>
    %c0_40 = arith.constant 0 : index
    %c0_41 = arith.constant 0 : index
    %58 = vector.load %arg2[%c0_40, %c0_41] : memref<1x128xi32, #tpu.memory_space<vmem>>, vector<1x128xi32>
    %c0_i32 = arith.constant 0 : i32
    %59 = vector.broadcast %c0_i32 : i32 to vector<1x128xi32>
    %60 = arith.cmpi eq, %58, %59 : vector<1x128xi32>
    %c1_i32 = arith.constant 1 : i32
    %61 = vector.broadcast %c1_i32 : i32 to vector<1x128xi32>
    %62 = arith.cmpi eq, %58, %61 : vector<1x128xi32>
    %c2_i32 = arith.constant 2 : i32
    %63 = vector.broadcast %c2_i32 : i32 to vector<1x128xi32>
    %64 = arith.cmpi eq, %58, %63 : vector<1x128xi32>
    %c3_i32 = arith.constant 3 : i32
    %65 = vector.broadcast %c3_i32 : i32 to vector<1x128xi32>
    %66 = arith.cmpi eq, %58, %65 : vector<1x128xi32>
    %c4_i32 = arith.constant 4 : i32
    %67 = vector.broadcast %c4_i32 : i32 to vector<1x128xi32>
    %68 = arith.cmpi eq, %58, %67 : vector<1x128xi32>
    %c5_i32 = arith.constant 5 : i32
    %69 = vector.broadcast %c5_i32 : i32 to vector<1x128xi32>
    %70 = arith.cmpi eq, %58, %69 : vector<1x128xi32>
    %c6_i32 = arith.constant 6 : i32
    %71 = vector.broadcast %c6_i32 : i32 to vector<1x128xi32>
    %72 = arith.cmpi eq, %58, %71 : vector<1x128xi32>
    %c7_i32 = arith.constant 7 : i32
    %73 = vector.broadcast %c7_i32 : i32 to vector<1x128xi32>
    %74 = arith.cmpi eq, %58, %73 : vector<1x128xi32>
    %cst_42 = arith.constant 0.000000e+00 : f32
    %75 = vector.broadcast %cst_42 : f32 to vector<8x128xf32>
    %cst_43 = arith.constant -1.000000e+30 : f32
    %76 = vector.shape_cast %60 : vector<1x128xi1> to vector<1x128xi1>
    %77 = vector.broadcast %76 : vector<1x128xi1> to vector<8x128xi1>
    %78 = vector.broadcast %cst_43 : f32 to vector<8x128xf32>
    %79 = arith.select %77, %57, %78 : vector<8x128xi1>, vector<8x128xf32>
    %cst_44 = arith.constant dense<0xFF800000> : vector<8xf32>
    %80 = vector.multi_reduction <maximumf>, %79, %cst_44 [1] : vector<8x128xf32> to vector<8xf32>
    %81 = vector.shape_cast %80 : vector<8xf32> to vector<8x1xf32>
    %82 = vector.shape_cast %60 : vector<1x128xi1> to vector<1x128xi1>
    %83 = vector.broadcast %82 : vector<1x128xi1> to vector<8x128xi1>
    %84 = vector.shape_cast %81 : vector<8x1xf32> to vector<8x1xf32>
    %85 = vector.broadcast %84 : vector<8x1xf32> to vector<8x128xf32>
    %86 = arith.select %83, %85, %75 : vector<8x128xi1>, vector<8x128xf32>
    %cst_45 = arith.constant -1.000000e+30 : f32
    %87 = vector.shape_cast %62 : vector<1x128xi1> to vector<1x128xi1>
    %88 = vector.broadcast %87 : vector<1x128xi1> to vector<8x128xi1>
    %89 = vector.broadcast %cst_45 : f32 to vector<8x128xf32>
    %90 = arith.select %88, %57, %89 : vector<8x128xi1>, vector<8x128xf32>
    %cst_46 = arith.constant dense<0xFF800000> : vector<8xf32>
    %91 = vector.multi_reduction <maximumf>, %90, %cst_46 [1] : vector<8x128xf32> to vector<8xf32>
    %92 = vector.shape_cast %91 : vector<8xf32> to vector<8x1xf32>
    %93 = vector.shape_cast %62 : vector<1x128xi1> to vector<1x128xi1>
    %94 = vector.broadcast %93 : vector<1x128xi1> to vector<8x128xi1>
    %95 = vector.shape_cast %92 : vector<8x1xf32> to vector<8x1xf32>
    %96 = vector.broadcast %95 : vector<8x1xf32> to vector<8x128xf32>
    %97 = arith.select %94, %96, %86 : vector<8x128xi1>, vector<8x128xf32>
    %cst_47 = arith.constant -1.000000e+30 : f32
    %98 = vector.shape_cast %64 : vector<1x128xi1> to vector<1x128xi1>
    %99 = vector.broadcast %98 : vector<1x128xi1> to vector<8x128xi1>
    %100 = vector.broadcast %cst_47 : f32 to vector<8x128xf32>
    %101 = arith.select %99, %57, %100 : vector<8x128xi1>, vector<8x128xf32>
    %cst_48 = arith.constant dense<0xFF800000> : vector<8xf32>
    %102 = vector.multi_reduction <maximumf>, %101, %cst_48 [1] : vector<8x128xf32> to vector<8xf32>
    %103 = vector.shape_cast %102 : vector<8xf32> to vector<8x1xf32>
    %104 = vector.shape_cast %64 : vector<1x128xi1> to vector<1x128xi1>
    %105 = vector.broadcast %104 : vector<1x128xi1> to vector<8x128xi1>
    %106 = vector.shape_cast %103 : vector<8x1xf32> to vector<8x1xf32>
    %107 = vector.broadcast %106 : vector<8x1xf32> to vector<8x128xf32>
    %108 = arith.select %105, %107, %97 : vector<8x128xi1>, vector<8x128xf32>
    %cst_49 = arith.constant -1.000000e+30 : f32
    %109 = vector.shape_cast %66 : vector<1x128xi1> to vector<1x128xi1>
    %110 = vector.broadcast %109 : vector<1x128xi1> to vector<8x128xi1>
    %111 = vector.broadcast %cst_49 : f32 to vector<8x128xf32>
    %112 = arith.select %110, %57, %111 : vector<8x128xi1>, vector<8x128xf32>
    %cst_50 = arith.constant dense<0xFF800000> : vector<8xf32>
    %113 = vector.multi_reduction <maximumf>, %112, %cst_50 [1] : vector<8x128xf32> to vector<8xf32>
    %114 = vector.shape_cast %113 : vector<8xf32> to vector<8x1xf32>
    %115 = vector.shape_cast %66 : vector<1x128xi1> to vector<1x128xi1>
    %116 = vector.broadcast %115 : vector<1x128xi1> to vector<8x128xi1>
    %117 = vector.shape_cast %114 : vector<8x1xf32> to vector<8x1xf32>
    %118 = vector.broadcast %117 : vector<8x1xf32> to vector<8x128xf32>
    %119 = arith.select %116, %118, %108 : vector<8x128xi1>, vector<8x128xf32>
    %cst_51 = arith.constant -1.000000e+30 : f32
    %120 = vector.shape_cast %68 : vector<1x128xi1> to vector<1x128xi1>
    %121 = vector.broadcast %120 : vector<1x128xi1> to vector<8x128xi1>
    %122 = vector.broadcast %cst_51 : f32 to vector<8x128xf32>
    %123 = arith.select %121, %57, %122 : vector<8x128xi1>, vector<8x128xf32>
    %cst_52 = arith.constant dense<0xFF800000> : vector<8xf32>
    %124 = vector.multi_reduction <maximumf>, %123, %cst_52 [1] : vector<8x128xf32> to vector<8xf32>
    %125 = vector.shape_cast %124 : vector<8xf32> to vector<8x1xf32>
    %126 = vector.shape_cast %68 : vector<1x128xi1> to vector<1x128xi1>
    %127 = vector.broadcast %126 : vector<1x128xi1> to vector<8x128xi1>
    %128 = vector.shape_cast %125 : vector<8x1xf32> to vector<8x1xf32>
    %129 = vector.broadcast %128 : vector<8x1xf32> to vector<8x128xf32>
    %130 = arith.select %127, %129, %119 : vector<8x128xi1>, vector<8x128xf32>
    %cst_53 = arith.constant -1.000000e+30 : f32
    %131 = vector.shape_cast %70 : vector<1x128xi1> to vector<1x128xi1>
    %132 = vector.broadcast %131 : vector<1x128xi1> to vector<8x128xi1>
    %133 = vector.broadcast %cst_53 : f32 to vector<8x128xf32>
    %134 = arith.select %132, %57, %133 : vector<8x128xi1>, vector<8x128xf32>
    %cst_54 = arith.constant dense<0xFF800000> : vector<8xf32>
    %135 = vector.multi_reduction <maximumf>, %134, %cst_54 [1] : vector<8x128xf32> to vector<8xf32>
    %136 = vector.shape_cast %135 : vector<8xf32> to vector<8x1xf32>
    %137 = vector.shape_cast %70 : vector<1x128xi1> to vector<1x128xi1>
    %138 = vector.broadcast %137 : vector<1x128xi1> to vector<8x128xi1>
    %139 = vector.shape_cast %136 : vector<8x1xf32> to vector<8x1xf32>
    %140 = vector.broadcast %139 : vector<8x1xf32> to vector<8x128xf32>
    %141 = arith.select %138, %140, %130 : vector<8x128xi1>, vector<8x128xf32>
    %cst_55 = arith.constant -1.000000e+30 : f32
    %142 = vector.shape_cast %72 : vector<1x128xi1> to vector<1x128xi1>
    %143 = vector.broadcast %142 : vector<1x128xi1> to vector<8x128xi1>
    %144 = vector.broadcast %cst_55 : f32 to vector<8x128xf32>
    %145 = arith.select %143, %57, %144 : vector<8x128xi1>, vector<8x128xf32>
    %cst_56 = arith.constant dense<0xFF800000> : vector<8xf32>
    %146 = vector.multi_reduction <maximumf>, %145, %cst_56 [1] : vector<8x128xf32> to vector<8xf32>
    %147 = vector.shape_cast %146 : vector<8xf32> to vector<8x1xf32>
    %148 = vector.shape_cast %72 : vector<1x128xi1> to vector<1x128xi1>
    %149 = vector.broadcast %148 : vector<1x128xi1> to vector<8x128xi1>
    %150 = vector.shape_cast %147 : vector<8x1xf32> to vector<8x1xf32>
    %151 = vector.broadcast %150 : vector<8x1xf32> to vector<8x128xf32>
    %152 = arith.select %149, %151, %141 : vector<8x128xi1>, vector<8x128xf32>
    %cst_57 = arith.constant -1.000000e+30 : f32
    %153 = vector.shape_cast %74 : vector<1x128xi1> to vector<1x128xi1>
    %154 = vector.broadcast %153 : vector<1x128xi1> to vector<8x128xi1>
    %155 = vector.broadcast %cst_57 : f32 to vector<8x128xf32>
    %156 = arith.select %154, %57, %155 : vector<8x128xi1>, vector<8x128xf32>
    %cst_58 = arith.constant dense<0xFF800000> : vector<8xf32>
    %157 = vector.multi_reduction <maximumf>, %156, %cst_58 [1] : vector<8x128xf32> to vector<8xf32>
    %158 = vector.shape_cast %157 : vector<8xf32> to vector<8x1xf32>
    %159 = vector.shape_cast %74 : vector<1x128xi1> to vector<1x128xi1>
    %160 = vector.broadcast %159 : vector<1x128xi1> to vector<8x128xi1>
    %161 = vector.shape_cast %158 : vector<8x1xf32> to vector<8x1xf32>
    %162 = vector.broadcast %161 : vector<8x1xf32> to vector<8x128xf32>
    %163 = arith.select %160, %162, %152 : vector<8x128xi1>, vector<8x128xf32>
    %164 = arith.subf %57, %163 : vector<8x128xf32>
    %165 = math.exp %164 : vector<8x128xf32>
    %cst_59 = arith.constant 1.000000e+00 : f32
    %166 = vector.broadcast %cst_59 : f32 to vector<8x128xf32>
    %cst_60 = arith.constant 0.000000e+00 : f32
    %167 = vector.shape_cast %60 : vector<1x128xi1> to vector<1x128xi1>
    %168 = vector.broadcast %167 : vector<1x128xi1> to vector<8x128xi1>
    %169 = vector.broadcast %cst_60 : f32 to vector<8x128xf32>
    %170 = arith.select %168, %165, %169 : vector<8x128xi1>, vector<8x128xf32>
    %cst_61 = arith.constant dense<0.000000e+00> : vector<8xf32>
    %171 = vector.multi_reduction <add>, %170, %cst_61 [1] : vector<8x128xf32> to vector<8xf32>
    %172 = vector.shape_cast %171 : vector<8xf32> to vector<8x1xf32>
    %173 = vector.shape_cast %60 : vector<1x128xi1> to vector<1x128xi1>
    %174 = vector.broadcast %173 : vector<1x128xi1> to vector<8x128xi1>
    %175 = vector.shape_cast %172 : vector<8x1xf32> to vector<8x1xf32>
    %176 = vector.broadcast %175 : vector<8x1xf32> to vector<8x128xf32>
    %177 = arith.select %174, %176, %166 : vector<8x128xi1>, vector<8x128xf32>
    %cst_62 = arith.constant 0.000000e+00 : f32
    %178 = vector.shape_cast %62 : vector<1x128xi1> to vector<1x128xi1>
    %179 = vector.broadcast %178 : vector<1x128xi1> to vector<8x128xi1>
    %180 = vector.broadcast %cst_62 : f32 to vector<8x128xf32>
    %181 = arith.select %179, %165, %180 : vector<8x128xi1>, vector<8x128xf32>
    %cst_63 = arith.constant dense<0.000000e+00> : vector<8xf32>
    %182 = vector.multi_reduction <add>, %181, %cst_63 [1] : vector<8x128xf32> to vector<8xf32>
    %183 = vector.shape_cast %182 : vector<8xf32> to vector<8x1xf32>
    %184 = vector.shape_cast %62 : vector<1x128xi1> to vector<1x128xi1>
    %185 = vector.broadcast %184 : vector<1x128xi1> to vector<8x128xi1>
    %186 = vector.shape_cast %183 : vector<8x1xf32> to vector<8x1xf32>
    %187 = vector.broadcast %186 : vector<8x1xf32> to vector<8x128xf32>
    %188 = arith.select %185, %187, %177 : vector<8x128xi1>, vector<8x128xf32>
    %cst_64 = arith.constant 0.000000e+00 : f32
    %189 = vector.shape_cast %64 : vector<1x128xi1> to vector<1x128xi1>
    %190 = vector.broadcast %189 : vector<1x128xi1> to vector<8x128xi1>
    %191 = vector.broadcast %cst_64 : f32 to vector<8x128xf32>
    %192 = arith.select %190, %165, %191 : vector<8x128xi1>, vector<8x128xf32>
    %cst_65 = arith.constant dense<0.000000e+00> : vector<8xf32>
    %193 = vector.multi_reduction <add>, %192, %cst_65 [1] : vector<8x128xf32> to vector<8xf32>
    %194 = vector.shape_cast %193 : vector<8xf32> to vector<8x1xf32>
    %195 = vector.shape_cast %64 : vector<1x128xi1> to vector<1x128xi1>
    %196 = vector.broadcast %195 : vector<1x128xi1> to vector<8x128xi1>
    %197 = vector.shape_cast %194 : vector<8x1xf32> to vector<8x1xf32>
    %198 = vector.broadcast %197 : vector<8x1xf32> to vector<8x128xf32>
    %199 = arith.select %196, %198, %188 : vector<8x128xi1>, vector<8x128xf32>
    %cst_66 = arith.constant 0.000000e+00 : f32
    %200 = vector.shape_cast %66 : vector<1x128xi1> to vector<1x128xi1>
    %201 = vector.broadcast %200 : vector<1x128xi1> to vector<8x128xi1>
    %202 = vector.broadcast %cst_66 : f32 to vector<8x128xf32>
    %203 = arith.select %201, %165, %202 : vector<8x128xi1>, vector<8x128xf32>
    %cst_67 = arith.constant dense<0.000000e+00> : vector<8xf32>
    %204 = vector.multi_reduction <add>, %203, %cst_67 [1] : vector<8x128xf32> to vector<8xf32>
    %205 = vector.shape_cast %204 : vector<8xf32> to vector<8x1xf32>
    %206 = vector.shape_cast %66 : vector<1x128xi1> to vector<1x128xi1>
    %207 = vector.broadcast %206 : vector<1x128xi1> to vector<8x128xi1>
    %208 = vector.shape_cast %205 : vector<8x1xf32> to vector<8x1xf32>
    %209 = vector.broadcast %208 : vector<8x1xf32> to vector<8x128xf32>
    %210 = arith.select %207, %209, %199 : vector<8x128xi1>, vector<8x128xf32>
    %cst_68 = arith.constant 0.000000e+00 : f32
    %211 = vector.shape_cast %68 : vector<1x128xi1> to vector<1x128xi1>
    %212 = vector.broadcast %211 : vector<1x128xi1> to vector<8x128xi1>
    %213 = vector.broadcast %cst_68 : f32 to vector<8x128xf32>
    %214 = arith.select %212, %165, %213 : vector<8x128xi1>, vector<8x128xf32>
    %cst_69 = arith.constant dense<0.000000e+00> : vector<8xf32>
    %215 = vector.multi_reduction <add>, %214, %cst_69 [1] : vector<8x128xf32> to vector<8xf32>
    %216 = vector.shape_cast %215 : vector<8xf32> to vector<8x1xf32>
    %217 = vector.shape_cast %68 : vector<1x128xi1> to vector<1x128xi1>
    %218 = vector.broadcast %217 : vector<1x128xi1> to vector<8x128xi1>
    %219 = vector.shape_cast %216 : vector<8x1xf32> to vector<8x1xf32>
    %220 = vector.broadcast %219 : vector<8x1xf32> to vector<8x128xf32>
    %221 = arith.select %218, %220, %210 : vector<8x128xi1>, vector<8x128xf32>
    %cst_70 = arith.constant 0.000000e+00 : f32
    %222 = vector.shape_cast %70 : vector<1x128xi1> to vector<1x128xi1>
    %223 = vector.broadcast %222 : vector<1x128xi1> to vector<8x128xi1>
    %224 = vector.broadcast %cst_70 : f32 to vector<8x128xf32>
    %225 = arith.select %223, %165, %224 : vector<8x128xi1>, vector<8x128xf32>
    %cst_71 = arith.constant dense<0.000000e+00> : vector<8xf32>
    %226 = vector.multi_reduction <add>, %225, %cst_71 [1] : vector<8x128xf32> to vector<8xf32>
    %227 = vector.shape_cast %226 : vector<8xf32> to vector<8x1xf32>
    %228 = vector.shape_cast %70 : vector<1x128xi1> to vector<1x128xi1>
    %229 = vector.broadcast %228 : vector<1x128xi1> to vector<8x128xi1>
    %230 = vector.shape_cast %227 : vector<8x1xf32> to vector<8x1xf32>
    %231 = vector.broadcast %230 : vector<8x1xf32> to vector<8x128xf32>
    %232 = arith.select %229, %231, %221 : vector<8x128xi1>, vector<8x128xf32>
    %cst_72 = arith.constant 0.000000e+00 : f32
    %233 = vector.shape_cast %72 : vector<1x128xi1> to vector<1x128xi1>
    %234 = vector.broadcast %233 : vector<1x128xi1> to vector<8x128xi1>
    %235 = vector.broadcast %cst_72 : f32 to vector<8x128xf32>
    %236 = arith.select %234, %165, %235 : vector<8x128xi1>, vector<8x128xf32>
    %cst_73 = arith.constant dense<0.000000e+00> : vector<8xf32>
    %237 = vector.multi_reduction <add>, %236, %cst_73 [1] : vector<8x128xf32> to vector<8xf32>
    %238 = vector.shape_cast %237 : vector<8xf32> to vector<8x1xf32>
    %239 = vector.shape_cast %72 : vector<1x128xi1> to vector<1x128xi1>
    %240 = vector.broadcast %239 : vector<1x128xi1> to vector<8x128xi1>
    %241 = vector.shape_cast %238 : vector<8x1xf32> to vector<8x1xf32>
    %242 = vector.broadcast %241 : vector<8x1xf32> to vector<8x128xf32>
    %243 = arith.select %240, %242, %232 : vector<8x128xi1>, vector<8x128xf32>
    %cst_74 = arith.constant 0.000000e+00 : f32
    %244 = vector.shape_cast %74 : vector<1x128xi1> to vector<1x128xi1>
    %245 = vector.broadcast %244 : vector<1x128xi1> to vector<8x128xi1>
    %246 = vector.broadcast %cst_74 : f32 to vector<8x128xf32>
    %247 = arith.select %245, %165, %246 : vector<8x128xi1>, vector<8x128xf32>
    %cst_75 = arith.constant dense<0.000000e+00> : vector<8xf32>
    %248 = vector.multi_reduction <add>, %247, %cst_75 [1] : vector<8x128xf32> to vector<8xf32>
    %249 = vector.shape_cast %248 : vector<8xf32> to vector<8x1xf32>
    %250 = vector.shape_cast %74 : vector<1x128xi1> to vector<1x128xi1>
    %251 = vector.broadcast %250 : vector<1x128xi1> to vector<8x128xi1>
    %252 = vector.shape_cast %249 : vector<8x1xf32> to vector<8x1xf32>
    %253 = vector.broadcast %252 : vector<8x1xf32> to vector<8x128xf32>
    %254 = arith.select %251, %253, %243 : vector<8x128xi1>, vector<8x128xf32>
    %255 = tpu.reciprocal %254 : vector<8x128xf32> -> vector<8x128xf32>
    %256 = arith.mulf %165, %255 : vector<8x128xf32>
    %c0_i32_76 = arith.constant 0 : i32
    %257 = vector.broadcast %c0_i32_76 : i32 to vector<1x128xi32>
    %258 = arith.cmpi sge, %58, %257 : vector<1x128xi32>
    %cst_77 = arith.constant 0.000000e+00 : f32
    %259 = vector.shape_cast %258 : vector<1x128xi1> to vector<1x128xi1>
    %260 = vector.broadcast %259 : vector<1x128xi1> to vector<8x128xi1>
    %261 = vector.broadcast %cst_77 : f32 to vector<8x128xf32>
    %262 = arith.select %260, %256, %261 : vector<8x128xi1>, vector<8x128xf32>
    %c0_78 = arith.constant 0 : index
    %c0_79 = arith.constant 0 : index
    %263 = vector.load %arg18[%c0_78, %c0_79] : memref<8x128xf32, #tpu.memory_space<vmem>>, vector<8x128xf32>
    tpu.vector_store %arg18[%c0_78, %c0_79], %262 {strides = array<i32>} : memref<8x128xf32, #tpu.memory_space<vmem>>, vector<8x128xf32>,
    return
  }
  func.func @transform_0(%arg0: i32) -> i32 {
    %c0_i32 = arith.constant 0 : i32
    %c0_i32_0 = arith.constant 0 : i32
    return %c0_i32 : i32
  }
  func.func @transform_1(%arg0: i32) -> (i32, i32) {
    %c0_i32 = arith.constant 0 : i32
    %c0_i32_0 = arith.constant 0 : i32
    %c0_i32_1 = arith.constant 0 : i32
    return %c0_i32, %c0_i32_0 : i32, i32
  }
  func.func @transform_2(%arg0: i32) -> (i32, i32) {
    %c0_i32 = arith.constant 0 : i32
    %c0_i32_0 = arith.constant 0 : i32
    return %arg0, %c0_i32 : i32, i32
  }
  func.func @transform_3(%arg0: i32) -> (i32, i32) {
    %c0_i32 = arith.constant 0 : i32
    %c0_i32_0 = arith.constant 0 : i32
    return %arg0, %c0_i32 : i32, i32
  }
  func.func @transform_4(%arg0: i32) -> (i32, i32) {
    %c0_i32 = arith.constant 0 : i32
    %c0_i32_0 = arith.constant 0 : i32
    return %arg0, %c0_i32 : i32, i32
  }
  func.func @transform_5(%arg0: i32) -> (i32, i32) {
    %c0_i32 = arith.constant 0 : i32
    %c0_i32_0 = arith.constant 0 : i32
    %c0_i32_1 = arith.constant 0 : i32
    return %c0_i32, %c0_i32_0 : i32, i32
  }
  func.func @transform_6(%arg0: i32) -> (i32, i32) {
    %c0_i32 = arith.constant 0 : i32
    %c0_i32_0 = arith.constant 0 : i32
    %c0_i32_1 = arith.constant 0 : i32
    return %c0_i32, %c0_i32_0 : i32, i32
  }
  func.func @transform_7(%arg0: i32) -> (i32, i32) {
    %c0_i32 = arith.constant 0 : i32
    %c0_i32_0 = arith.constant 0 : i32
    %c0_i32_1 = arith.constant 0 : i32
    return %c0_i32, %c0_i32_0 : i32, i32
  }
  func.func @transform_8(%arg0: i32) -> (i32, i32) {
    %c0_i32 = arith.constant 0 : i32
    %c0_i32_0 = arith.constant 0 : i32
    %c0_i32_1 = arith.constant 0 : i32
    return %c0_i32, %c0_i32_0 : i32, i32
  }
  func.func @transform_9(%arg0: i32) -> (i32, i32) {
    %c0_i32 = arith.constant 0 : i32
    %c0_i32_0 = arith.constant 0 : i32
    %c0_i32_1 = arith.constant 0 : i32
    return %c0_i32, %c0_i32_0 : i32, i32
  }
  func.func @transform_10(%arg0: i32) -> (i32, i32) {
    %c0_i32 = arith.constant 0 : i32
    %c0_i32_0 = arith.constant 0 : i32
    %c0_i32_1 = arith.constant 0 : i32
    return %c0_i32, %c0_i32_0 : i32, i32
  }
  func.func @transform_11(%arg0: i32) -> (i32, i32) {
    %c0_i32 = arith.constant 0 : i32
    %c0_i32_0 = arith.constant 0 : i32
    %c0_i32_1 = arith.constant 0 : i32
    return %c0_i32, %c0_i32_0 : i32, i32
  }
  func.func @transform_12(%arg0: i32) -> (i32, i32) {
    %c0_i32 = arith.constant 0 : i32
    %c0_i32_0 = arith.constant 0 : i32
    %c0_i32_1 = arith.constant 0 : i32
    return %c0_i32, %c0_i32_0 : i32, i32
  }
  func.func @transform_13(%arg0: i32) -> (i32, i32) {
    %c0_i32 = arith.constant 0 : i32
    %c0_i32_0 = arith.constant 0 : i32
    %c0_i32_1 = arith.constant 0 : i32
    return %c0_i32, %c0_i32_0 : i32, i32
  }
  func.func @transform_14(%arg0: i32) -> (i32, i32) {
    %c0_i32 = arith.constant 0 : i32
    %c0_i32_0 = arith.constant 0 : i32
    %c0_i32_1 = arith.constant 0 : i32
    return %c0_i32, %c0_i32_0 : i32, i32
  }
  func.func @transform_15(%arg0: i32) -> (i32, i32) {
    %c0_i32 = arith.constant 0 : i32
    %c0_i32_0 = arith.constant 0 : i32
    %c0_i32_1 = arith.constant 0 : i32
    return %c0_i32, %c0_i32_0 : i32, i32
  }
  func.func @transform_16(%arg0: i32) -> (i32, i32) {
    %c0_i32 = arith.constant 0 : i32
    %c0_i32_0 = arith.constant 0 : i32
    %c0_i32_1 = arith.constant 0 : i32
    return %c0_i32, %c0_i32_0 : i32, i32
  }
  func.func @transform_17(%arg0: i32) -> (i32, i32) {
    %c0_i32 = arith.constant 0 : i32
    %c0_i32_0 = arith.constant 0 : i32
    return %arg0, %c0_i32 : i32, i32
  }
}

</mosaic_0001>

<llo_original>
// kernel: run_fused.1
$region0: #{run_fused.1}
  #allocation0 [shape = 'u32[]', space=smem, size = 0x4, offset = 0x4, fixed_abs, tag = 'smem constant byte address 0x4 - core index']
  #allocation1 [shape = 'u32[144,128]{1,0:T(1,128)}', space=vmem, size = 0x12000, scoped, tag = 'internal scratch']
  %s0 = inlined_call_operand.vmem [shape: f32[3], index: 0, kind: input, shape index: {}]
  %s1 = inlined_call_operand.vmem [shape: s32[1,128], index: 1, kind: input, shape index: {}]
  %s2 = inlined_call_operand.vmem [shape: f32[8,256], index: 2, kind: input, shape index: {}]
  %s3 = inlined_call_operand.vmem [shape: f32[8,4], index: 3, kind: input, shape index: {}]
  %s4 = inlined_call_operand.vmem [shape: f32[8,4], index: 4, kind: input, shape index: {}]
  %s5 = inlined_call_operand.hbm [shape: bf16[256,256], index: 5, kind: input, shape index: {}]
  %s6 = inlined_call_operand.vmem [shape: bf16[4,256], index: 6, kind: input, shape index: {}]
  %s7 = inlined_call_operand.vmem [shape: bf16[4,256], index: 7, kind: input, shape index: {}]
  %s8 = inlined_call_operand.vmem [shape: f32[1,256], index: 8, kind: input, shape index: {}]
  %s9 = inlined_call_operand.hbm [shape: bf16[256,128], index: 9, kind: input, shape index: {}]
  %s10 = inlined_call_operand.vmem [shape: f32[1,128], index: 10, kind: input, shape index: {}]
  %s11 = inlined_call_operand.vmem [shape: bf16[128,128], index: 11, kind: input, shape index: {}]
  %s12 = inlined_call_operand.vmem [shape: f32[1,128], index: 12, kind: input, shape index: {}]
  %s13 = inlined_call_operand.hbm [shape: bf16[128,1024], index: 13, kind: input, shape index: {}]
  %s14 = inlined_call_operand.vmem [shape: f32[1,1024], index: 14, kind: input, shape index: {}]
  %s15 = inlined_call_operand.hbm [shape: bf16[1024,128], index: 15, kind: input, shape index: {}]
  %s16 = inlined_call_operand.vmem [shape: f32[1,128], index: 16, kind: input, shape index: {}]
  %s17 = inlined_call_operand.vmem [shape: f32[8,128], index: 17, kind: output, shape index: {}]
  %s18 = sld [smem:[#allocation0]]
  $region98: #{run_fused.1} parent=0
    _
  %s20 = ssub.s32 1, %s18
  %s21 = scalar_select 0, %s20, %s18
  $region1: #{run_fused.1} parent=0
    #allocation2 [shape = 'u8[512]{0}', space=smem, size = 0x200, scoped, tag = 'input window, operand 0, single buffered']
    #allocation3 [shape = 's32[1]{0}', space=sflag, size = 0x4, scoped, tag = 'scoped memory for run_fused.1']
    #allocation4 [shape = 's32[1]{0}', space=sflag, size = 0x4, scoped, tag = 'scoped memory for run_fused.1']
    #allocation5 [shape = 'u8[131072]{0}', space=vmem, size = 0x20000, scoped, tag = 'input window, operand 5, single buffered']
    #allocation6 [shape = 'u8[65536]{0}', space=vmem, size = 0x10000, scoped, tag = 'input window, operand 9, single buffered']
    #allocation7 [shape = 's32[1]{0}', space=sflag, size = 0x4, scoped, tag = 'scoped memory for run_fused.1']
    #allocation8 [shape = 'u8[262144]{0}', space=vmem, size = 0x40000, scoped, tag = 'input window, operand 13, single buffered']
    #allocation9 [shape = 'u8[262144]{0}', space=vmem, size = 0x40000, scoped, tag = 'input window, operand 15, single buffered']
    #allocation10 [shape = 's32[1]{0}', space=sflag, size = 0x4, scoped, tag = 'scoped memory for run_fused.1']
    %22 = vsyncpa [#allocation4], 0
    %23 = vsyncpa [#allocation3], 0
    %24 = vsyncpa [#allocation7], 0
    %25 = vsyncpa [#allocation10], 0
    // Predicated region
    $region2: #{run_fused.1} parent=1 // pred_check
      _
    $region3: #{run_fused.1} parent=1 // pred_check_branch
      %27 = sbr.rel (0) target = $region5
    $region4: #{run_fused.1} parent=1 // pred_region
      %s29 = ssub.s32 16, 16
      %30 = vsyncadd [#allocation4], %s29
      %s32 = sshll.u32 %s0, 4
      %s33 = int_to_ptr.vmem [resolvable:$true] %s32
      %35 = dma.vmem_to_smem %s33, 16, [#allocation2], [#allocation4]
    $region5: #{run_fused.1} parent=1 // pred_fallthru
      _
    // Predicated region
    $region6: #{run_fused.1} parent=1 // pred_check
      _
    $region7: #{run_fused.1} parent=1 // pred_check_branch
      %37 = sbr.rel (0) target = $region9
    $region8: #{run_fused.1} parent=1 // pred_region
      _
    $region9: #{run_fused.1} parent=1 // pred_fallthru
      _
    // Predicated region
    $region10: #{run_fused.1} parent=1 // pred_check
      _
    $region11: #{run_fused.1} parent=1 // pred_check_branch
      %39 = sbr.rel (0) target = $region13
    $region12: #{run_fused.1} parent=1 // pred_region
      _
    $region13: #{run_fused.1} parent=1 // pred_fallthru
      _
    // Predicated region
    $region14: #{run_fused.1} parent=1 // pred_check
      _
    $region15: #{run_fused.1} parent=1 // pred_check_branch
      %41 = sbr.rel (0) target = $region17
    $region16: #{run_fused.1} parent=1 // pred_region
      _
    $region17: #{run_fused.1} parent=1 // pred_fallthru
      _
    // Predicated region
    $region18: #{run_fused.1} parent=1 // pred_check
      _
    $region19: #{run_fused.1} parent=1 // pred_check_branch
      %43 = sbr.rel (0) target = $region21
    $region20: #{run_fused.1} parent=1 // pred_region
      _
    $region21: #{run_fused.1} parent=1 // pred_fallthru
      _
    // Predicated region
    $region22: #{run_fused.1} parent=1 // pred_check
      _
    $region23: #{run_fused.1} parent=1 // pred_check_branch
      %45 = sbr.rel (0) target = $region25
    $region24: #{run_fused.1} parent=1 // pred_region
      %s47 = ssub.s32 4096, 4096
      %48 = vsyncadd [#allocation3], %s47
      %s49 = sshll.u32 [#allocation5], 4
      %s50 = int_to_ptr.vmem [resolvable:$true] %s49
      %55 = dma.hbm_to_vmem [thread:$0]  %s5, 4096, %s50, [#allocation3], 128, 128, 8
    $region25: #{run_fused.1} parent=1 // pred_fallthru
      _
    // Predicated region
    $region26: #{run_fused.1} parent=1 // pred_check
      _
    $region27: #{run_fused.1} parent=1 // pred_check_branch
      %57 = sbr.rel (0) target = $region29
    $region28: #{run_fused.1} parent=1 // pred_region
      _
    $region29: #{run_fused.1} parent=1 // pred_fallthru
      _
    // Predicated region
    $region30: #{run_fused.1} parent=1 // pred_check
      _
    $region31: #{run_fused.1} parent=1 // pred_check_branch
      %59 = sbr.rel (0) target = $region33
    $region32: #{run_fused.1} parent=1 // pred_region
      _
    $region33: #{run_fused.1} parent=1 // pred_fallthru
      _
    // Predicated region
    $region34: #{run_fused.1} parent=1 // pred_check
      _
    $region35: #{run_fused.1} parent=1 // pred_check_branch
      %61 = sbr.rel (0) target = $region37
    $region36: #{run_fused.1} parent=1 // pred_region
      _
    $region37: #{run_fused.1} parent=1 // pred_fallthru
      _
    // Predicated region
    $region38: #{run_fused.1} parent=1 // pred_check
      _
    $region39: #{run_fused.1} parent=1 // pred_check_branch
      %63 = sbr.rel (0) target = $region41
    $region40: #{run_fused.1} parent=1 // pred_region
      %s65 = ssub.s32 2048, 2048
      %66 = vsyncadd [#allocation7], %s65
      %s67 = sshll.u32 [#allocation6], 4
      %s68 = int_to_ptr.vmem [resolvable:$true] %s67
      %73 = dma.hbm_to_vmem [thread:$0]  %s9, 2048, %s68, [#allocation7], 64, 64, 4
    $region41: #{run_fused.1} parent=1 // pred_fallthru
      _
    // Predicated region
    $region42: #{run_fused.1} parent=1 // pred_check
      _
    $region43: #{run_fused.1} parent=1 // pred_check_branch
      %75 = sbr.rel (0) target = $region45
    $region44: #{run_fused.1} parent=1 // pred_region
      _
    $region45: #{run_fused.1} parent=1 // pred_fallthru
      _
    // Predicated region
    $region46: #{run_fused.1} parent=1 // pred_check
      _
    $region47: #{run_fused.1} parent=1 // pred_check_branch
      %77 = sbr.rel (0) target = $region49
    $region48: #{run_fused.1} parent=1 // pred_region
      _
    $region49: #{run_fused.1} parent=1 // pred_fallthru
      _
    // Predicated region
    $region50: #{run_fused.1} parent=1 // pred_check
      _
    $region51: #{run_fused.1} parent=1 // pred_check_branch
      %79 = sbr.rel (0) target = $region53
    $region52: #{run_fused.1} parent=1 // pred_region
      _
    $region53: #{run_fused.1} parent=1 // pred_fallthru
      _
    // Predicated region
    $region54: #{run_fused.1} parent=1 // pred_check
      _
    $region55: #{run_fused.1} parent=1 // pred_check_branch
      %81 = sbr.rel (0) target = $region57
    $region56: #{run_fused.1} parent=1 // pred_region
      %s83 = ssub.s32 8192, 8192
      %84 = vsyncadd [#allocation7], %s83
      %s85 = sshll.u32 [#allocation8], 4
      %s86 = int_to_ptr.vmem [resolvable:$true] %s85
      %91 = dma.hbm_to_vmem [thread:$0]  %s13, 8192, %s86, [#allocation7], 512, 512, 32
    $region57: #{run_fused.1} parent=1 // pred_fallthru
      _
    // Predicated region
    $region58: #{run_fused.1} parent=1 // pred_check
      _
    $region59: #{run_fused.1} parent=1 // pred_check_branch
      %93 = sbr.rel (0) target = $region61
    $region60: #{run_fused.1} parent=1 // pred_region
      _
    $region61: #{run_fused.1} parent=1 // pred_fallthru
      _
    // Predicated region
    $region62: #{run_fused.1} parent=1 // pred_check
      _
    $region63: #{run_fused.1} parent=1 // pred_check_branch
      %95 = sbr.rel (0) target = $region65
    $region64: #{run_fused.1} parent=1 // pred_region
      %s97 = ssub.s32 8192, 8192
      %98 = vsyncadd [#allocation10], %s97
      %s99 = sshll.u32 [#allocation9], 4
      %s100 = int_to_ptr.vmem [resolvable:$true] %s99
      %105 = dma.hbm_to_vmem [thread:$0]  %s15, 8192, %s100, [#allocation10], 64, 64, 4
    $region65: #{run_fused.1} parent=1 // pred_fallthru
      _
    // Predicated region
    $region66: #{run_fused.1} parent=1 // pred_check
      _
    $region67: #{run_fused.1} parent=1 // pred_check_branch
      %107 = sbr.rel (0) target = $region69
    $region68: #{run_fused.1} parent=1 // pred_region
      _
    $region69: #{run_fused.1} parent=1 // pred_fallthru
      _
    // Predicated region
    $region70: #{run_fused.1} parent=1 // pred_check
      _
    $region71: #{run_fused.1} parent=1 // pred_check_branch
      %109 = sbr.rel (0) target = $region73
    $region72: #{run_fused.1} parent=1 // pred_region
      %110 = dma.done [#allocation4], 16
    $region73: #{run_fused.1} parent=1 // pred_fallthru
      _
    // Predicated region
    $region74: #{run_fused.1} parent=1 // pred_check
      _
    $region75: #{run_fused.1} parent=1 // pred_check_branch
      %112 = sbr.rel (0) target = $region77
    $region76: #{run_fused.1} parent=1 // pred_region
      %113 = dma.done [#allocation3], 4096
    $region77: #{run_fused.1} parent=1 // pred_fallthru
      _
    // Predicated region
    $region78: #{run_fused.1} parent=1 // pred_check
      _
    $region79: #{run_fused.1} parent=1 // pred_check_branch
      %115 = sbr.rel (0) target = $region81
    $region80: #{run_fused.1} parent=1 // pred_region
      %116 = dma.done [#allocation7], 2048
    $region81: #{run_fused.1} parent=1 // pred_fallthru
      _
    // Predicated region
    $region82: #{run_fused.1} parent=1 // pred_check
      _
    $region83: #{run_fused.1} parent=1 // pred_check_branch
      %118 = sbr.rel (0) target = $region85
    $region84: #{run_fused.1} parent=1 // pred_region
      %119 = dma.done [#allocation7], 8192
    $region85: #{run_fused.1} parent=1 // pred_fallthru
      _
    // Predicated region
    $region86: #{run_fused.1} parent=1 // pred_check
      _
    $region87: #{run_fused.1} parent=1 // pred_check_branch
      %121 = sbr.rel (0) target = $region89
    $region88: #{run_fused.1} parent=1 // pred_region
      %122 = dma.done [#allocation10], 8192
    $region89: #{run_fused.1} parent=1 // pred_fallthru
      _
    %123 = sfence
    %s125 = sld [smem:[#allocation2]]
    %s126 = sld [smem:[#allocation2 + $0x1]]
    %s127 = sld [smem:[#allocation2 + $0x2]]
    %v128 = vld [vmem:[%s2] sm:$0xff]
    %v129 = vld [vmem:[%s2 + $0x8] sm:$0xff]
    %v130 = vpack.c.bf16 %v128, %v128
    %v131 = vpack.c.bf16 %v129, %v129
    %v132 = vld [vmem:[#allocation5] sm:$0xff]
    %v133 = vld [vmem:[#allocation5 + $0x8] sm:$0xff]
    %v134 = vld [vmem:[#allocation5 + $0x10] sm:$0xff]
    %v135 = vld [vmem:[#allocation5 + $0x18] sm:$0xff]
    %v136 = vld [vmem:[#allocation5 + $0x20] sm:$0xff]
    %v137 = vld [vmem:[#allocation5 + $0x28] sm:$0xff]
    %v138 = vld [vmem:[#allocation5 + $0x30] sm:$0xff]
    %v139 = vld [vmem:[#allocation5 + $0x38] sm:$0xff]
    %v140 = vld [vmem:[#allocation5 + $0x40] sm:$0xff]
    %v141 = vld [vmem:[#allocation5 + $0x48] sm:$0xff]
    %v142 = vld [vmem:[#allocation5 + $0x50] sm:$0xff]
    %v143 = vld [vmem:[#allocation5 + $0x58] sm:$0xff]
    %v144 = vld [vmem:[#allocation5 + $0x60] sm:$0xff]
    %v145 = vld [vmem:[#allocation5 + $0x68] sm:$0xff]
    %v146 = vld [vmem:[#allocation5 + $0x70] sm:$0xff]
    %v147 = vld [vmem:[#allocation5 + $0x78] sm:$0xff]
    %v148 = vld [vmem:[#allocation5 + $0x80] sm:$0xff]
    %v149 = vld [vmem:[#allocation5 + $0x88] sm:$0xff]
    %v150 = vld [vmem:[#allocation5 + $0x90] sm:$0xff]
    %v151 = vld [vmem:[#allocation5 + $0x98] sm:$0xff]
    %v152 = vld [vmem:[#allocation5 + $0xa0] sm:$0xff]
    %v153 = vld [vmem:[#allocation5 + $0xa8] sm:$0xff]
    %v154 = vld [vmem:[#allocation5 + $0xb0] sm:$0xff]
    %v155 = vld [vmem:[#allocation5 + $0xb8] sm:$0xff]
    %v156 = vld [vmem:[#allocation5 + $0xc0] sm:$0xff]
    %v157 = vld [vmem:[#allocation5 + $0xc8] sm:$0xff]
    %v158 = vld [vmem:[#allocation5 + $0xd0] sm:$0xff]
    %v159 = vld [vmem:[#allocation5 + $0xd8] sm:$0xff]
    %v160 = vld [vmem:[#allocation5 + $0xe0] sm:$0xff]
    %v161 = vld [vmem:[#allocation5 + $0xe8] sm:$0xff]
    %v162 = vld [vmem:[#allocation5 + $0xf0] sm:$0xff]
    %v163 = vld [vmem:[#allocation5 + $0xf8] sm:$0xff]
    %v196 = vunpack.c.l.b16 %v132
    %v197 = vunpack.c.h.b16 %v132
    %v198 = vunpack.c.l.b16 %v133
    %v199 = vunpack.c.h.b16 %v133
    %v200 = vunpack.c.l.b16 %v134
    %v201 = vunpack.c.h.b16 %v134
    %v202 = vunpack.c.l.b16 %v135
    %v203 = vunpack.c.h.b16 %v135
    %v204 = vunpack.c.l.b16 %v136
    %v205 = vunpack.c.h.b16 %v136
    %v206 = vunpack.c.l.b16 %v137
    %v207 = vunpack.c.h.b16 %v137
    %v208 = vunpack.c.l.b16 %v138
    %v209 = vunpack.c.h.b16 %v138
    %v210 = vunpack.c.l.b16 %v139
    %v211 = vunpack.c.h.b16 %v139
    %v212 = vunpack.c.l.b16 %v140
    %v213 = vunpack.c.h.b16 %v140
    %v214 = vunpack.c.l.b16 %v141
    %v215 = vunpack.c.h.b16 %v141
    %v216 = vunpack.c.l.b16 %v142
    %v217 = vunpack.c.h.b16 %v142
    %v218 = vunpack.c.l.b16 %v143
    %v219 = vunpack.c.h.b16 %v143
    %v220 = vunpack.c.l.b16 %v144
    %v221 = vunpack.c.h.b16 %v144
    %v222 = vunpack.c.l.b16 %v145
    %v223 = vunpack.c.h.b16 %v145
    %v224 = vunpack.c.l.b16 %v146
    %v225 = vunpack.c.h.b16 %v146
    %v226 = vunpack.c.l.b16 %v147
    %v227 = vunpack.c.h.b16 %v147
    %v228 = vunpack.c.l.b16 %v148
    %v229 = vunpack.c.h.b16 %v148
    %v230 = vunpack.c.l.b16 %v149
    %v231 = vunpack.c.h.b16 %v149
    %v232 = vunpack.c.l.b16 %v150
    %v233 = vunpack.c.h.b16 %v150
    %v234 = vunpack.c.l.b16 %v151
    %v235 = vunpack.c.h.b16 %v151
    %v236 = vunpack.c.l.b16 %v152
    %v237 = vunpack.c.h.b16 %v152
    %v238 = vunpack.c.l.b16 %v153
    %v239 = vunpack.c.h.b16 %v153
    %v240 = vunpack.c.l.b16 %v154
    %v241 = vunpack.c.h.b16 %v154
    %v242 = vunpack.c.l.b16 %v155
    %v243 = vunpack.c.h.b16 %v155
    %v244 = vunpack.c.l.b16 %v156
    %v245 = vunpack.c.h.b16 %v156
    %v246 = vunpack.c.l.b16 %v157
    %v247 = vunpack.c.h.b16 %v157
    %v248 = vunpack.c.l.b16 %v158
    %v249 = vunpack.c.h.b16 %v158
    %v250 = vunpack.c.l.b16 %v159
    %v251 = vunpack.c.h.b16 %v159
    %v252 = vunpack.c.l.b16 %v160
    %v253 = vunpack.c.h.b16 %v160
    %v254 = vunpack.c.l.b16 %v161
    %v255 = vunpack.c.h.b16 %v161
    %v256 = vunpack.c.l.b16 %v162
    %v257 = vunpack.c.h.b16 %v162
    %v258 = vunpack.c.l.b16 %v163
    %v259 = vunpack.c.h.b16 %v163
    %v260 = vpack.c.b16 %v198, %v196
    %v261 = vpack.c.b16 %v199, %v197
    %v262 = vpack.c.b16 %v202, %v200
    %v263 = vpack.c.b16 %v203, %v201
    %v264 = vpack.c.b16 %v206, %v204
    %v265 = vpack.c.b16 %v207, %v205
    %v266 = vpack.c.b16 %v210, %v208
    %v267 = vpack.c.b16 %v211, %v209
    %v268 = vpack.c.b16 %v214, %v212
    %v269 = vpack.c.b16 %v215, %v213
    %v270 = vpack.c.b16 %v218, %v216
    %v271 = vpack.c.b16 %v219, %v217
    %v272 = vpack.c.b16 %v222, %v220
    %v273 = vpack.c.b16 %v223, %v221
    %v274 = vpack.c.b16 %v226, %v224
    %v275 = vpack.c.b16 %v227, %v225
    %v276 = vpack.c.b16 %v230, %v228
    %v277 = vpack.c.b16 %v231, %v229
    %v278 = vpack.c.b16 %v234, %v232
    %v279 = vpack.c.b16 %v235, %v233
    %v280 = vpack.c.b16 %v238, %v236
    %v281 = vpack.c.b16 %v239, %v237
    %v282 = vpack.c.b16 %v242, %v240
    %v283 = vpack.c.b16 %v243, %v241
    %v284 = vpack.c.b16 %v246, %v244
    %v285 = vpack.c.b16 %v247, %v245
    %v286 = vpack.c.b16 %v250, %v248
    %v287 = vpack.c.b16 %v251, %v249
    %v288 = vpack.c.b16 %v254, %v252
    %v289 = vpack.c.b16 %v255, %v253
    %v290 = vpack.c.b16 %v258, %v256
    %v291 = vpack.c.b16 %v259, %v257
    %324 = vmatprep.subr.bf16.mxu0 %v261
    %325 = vmatpush1.bf16.msra.mxu0 %v260
    %326 = vmatprep.subr.bf16.mxu0 %v263
    %327 = vmatpush1.bf16.msra.mxu0 %v262
    %328 = vmatprep.subr.bf16.mxu0 %v265
    %329 = vmatpush1.bf16.msra.mxu0 %v264
    %330 = vmatprep.subr.bf16.mxu0 %v267
    %331 = vmatpush1.bf16.msra.mxu0 %v266
    %332 = vmatprep.subr.bf16.mxu0 %v269
    %333 = vmatpush1.bf16.msra.mxu0 %v268
    %334 = vmatprep.subr.bf16.mxu0 %v271
    %335 = vmatpush1.bf16.msra.mxu0 %v270
    %336 = vmatprep.subr.bf16.mxu0 %v273
    %337 = vmatpush1.bf16.msra.mxu0 %v272
    %338 = vmatprep.subr.bf16.mxu0 %v275
    %339 = vmatpush1.bf16.msra.mxu0 %v274
    %340 = vmatprep.subr.bf16.mxu0 %v277
    %341 = vmatpush1.bf16.msra.mxu0 %v276
    %342 = vmatprep.subr.bf16.mxu0 %v279
    %343 = vmatpush1.bf16.msra.mxu0 %v278
    %344 = vmatprep.subr.bf16.mxu0 %v281
    %345 = vmatpush1.bf16.msra.mxu0 %v280
    %346 = vmatprep.subr.bf16.mxu0 %v283
    %347 = vmatpush1.bf16.msra.mxu0 %v282
    %348 = vmatprep.subr.bf16.mxu0 %v285
    %349 = vmatpush1.bf16.msra.mxu0 %v284
    %350 = vmatprep.subr.bf16.mxu0 %v287
    %351 = vmatpush1.bf16.msra.mxu0 %v286
    %352 = vmatprep.subr.bf16.mxu0 %v289
    %353 = vmatpush1.bf16.msra.mxu0 %v288
    %354 = vmatprep.subr.bf16.mxu0 %v291
    %355 = vmatpush1.bf16.msra.mxu0 %v290
    %356 = vmatprep.mubr.bf16.mxu0 %v131
    %357 = vmatmul.mubr.bf16.gmra.mrb[0].mxu0 %v130
    %v358 = vpop.f32.mrb[0].mxu0
    %v359 = vadd.f32 0.0, %v358
    %v360 = vpop.f32.mrb[0].mxu0
    %v361 = vadd.f32 0.0, %v360
    %v362 = vpop.f32.mrb[0].mxu0
    %v363 = vpop.f32.mrb[0].mxu0
    %364 = vdwg.mxu0
    %v365 = vstv %s125
    %v366 = vmul.f32 %v359, %v365
    %v367 = vmul.f32 %v361, %v365
    %v368 = vld [vmem:[%s3] sm:$0xff]
    %v369 = vpack.c.bf16 %v368, %v368
    %v370 = vld [vmem:[%s6] sm:$0xf]
    %v373 = vunpack.c.l.s4 1983009808
    %v374 = vunpack.c.0.s8 %v373
    %v375 = vlaneseq
    %v376 = vshrl.u32 %v375, 7
    %v377 = vsub.s32 %v374, %v376
    %v378 = vrot.slane %v370, %v377
    %v379 = vcombine.high %v378, %v378
    %vm380 = vcmask 31744
    %v382 = vsel %vm380, %v369, 0
    %vm384 = vcmask 1041408
    %v386 = vsel %vm384, %v378, 0
    %v389 = vsel %vm384, %v379, 0
    %391 = vmatprep.subr.bf16.mxu0 %v389
    %392 = vmatpush1.bf16.msra.mxu0 %v386
    %393 = vmatprep.subr.bf16.mxu0 0
    %394 = vmatpush1.bf16.msra.mxu0 0
    %395 = vmatprep.subr.bf16.mxu0 0
    %396 = vmatpush1.bf16.msra.mxu0 0
    %397 = vmatprep.subr.bf16.mxu0 0
    %398 = vmatpush1.bf16.msra.mxu0 0
    %399 = vmatprep.subr.bf16.mxu0 0
    %400 = vmatpush1.bf16.msra.mxu0 0
    %401 = vmatprep.subr.bf16.mxu0 0
    %402 = vmatpush1.bf16.msra.mxu0 0
    %403 = vmatprep.subr.bf16.mxu0 0
    %404 = vmatpush1.bf16.msra.mxu0 0
    %405 = vmatprep.subr.bf16.mxu0 0
    %406 = vmatpush1.bf16.msra.mxu0 0
    %407 = vmatprep.subr.bf16.mxu0 0
    %408 = vmatpush1.bf16.msra.mxu0 0
    %409 = vmatprep.subr.bf16.mxu0 0
    %410 = vmatpush1.bf16.msra.mxu0 0
    %411 = vmatprep.subr.bf16.mxu0 0
    %412 = vmatpush1.bf16.msra.mxu0 0
    %413 = vmatprep.subr.bf16.mxu0 0
    %414 = vmatpush1.bf16.msra.mxu0 0
    %415 = vmatprep.subr.bf16.mxu0 0
    %416 = vmatpush1.bf16.msra.mxu0 0
    %417 = vmatprep.subr.bf16.mxu0 0
    %418 = vmatpush1.bf16.msra.mxu0 0
    %419 = vmatprep.subr.bf16.mxu0 0
    %420 = vmatpush1.bf16.msra.mxu0 0
    %421 = vmatprep.subr.bf16.mxu0 0
    %422 = vmatpush1.bf16.msra.mxu0 0
    %423 = vmatprep.mubr.bf16.mxu0 0
    %424 = vmatmul.mubr.bf16.gmra.mrb[0].mxu0 %v382
    %v425 = vpop.f32.mrb[0].mxu0
    %v426 = vadd.f32 0.0, %v425
    %v427 = vpop.f32.mrb[0].mxu0
    %v428 = vadd.f32 0.0, %v427
    %v429 = vpop.f32.mrb[0].mxu0
    %v430 = vpop.f32.mrb[0].mxu0
    %431 = vdwg.mxu0
    %v432 = vstv %s126
    %v433 = vmul.f32 %v426, %v432
    %v434 = vmul.f32 %v428, %v432
    %v435 = vadd.f32 %v366, %v433
    %v436 = vadd.f32 %v367, %v434
    %v437 = vld [vmem:[%s4] sm:$0xff]
    %v438 = vpack.c.bf16 %v437, %v437
    %v439 = vld [vmem:[%s7] sm:$0xf]
    %v442 = vunpack.c.l.s4 1983009808
    %v443 = vunpack.c.0.s8 %v442
    %v444 = vlaneseq
    %v445 = vshrl.u32 %v444, 7
    %v446 = vsub.s32 %v443, %v445
    %v447 = vrot.slane %v439, %v446
    %v448 = vcombine.high %v447, %v447
    %v450 = vsel %vm380, %v438, 0
    %v453 = vsel %vm384, %v447, 0
    %v456 = vsel %vm384, %v448, 0
    %458 = vmatprep.subr.bf16.mxu0 %v456
    %459 = vmatpush1.bf16.msra.mxu0 %v453
    %460 = vmatprep.subr.bf16.mxu0 0
    %461 = vmatpush1.bf16.msra.mxu0 0
    %462 = vmatprep.subr.bf16.mxu0 0
    %463 = vmatpush1.bf16.msra.mxu0 0
    %464 = vmatprep.subr.bf16.mxu0 0
    %465 = vmatpush1.bf16.msra.mxu0 0
    %466 = vmatprep.subr.bf16.mxu0 0
    %467 = vmatpush1.bf16.msra.mxu0 0
    %468 = vmatprep.subr.bf16.mxu0 0
    %469 = vmatpush1.bf16.msra.mxu0 0
    %470 = vmatprep.subr.bf16.mxu0 0
    %471 = vmatpush1.bf16.msra.mxu0 0
    %472 = vmatprep.subr.bf16.mxu0 0
    %473 = vmatpush1.bf16.msra.mxu0 0
    %474 = vmatprep.subr.bf16.mxu0 0
    %475 = vmatpush1.bf16.msra.mxu0 0
    %476 = vmatprep.subr.bf16.mxu0 0
    %477 = vmatpush1.bf16.msra.mxu0 0
    %478 = vmatprep.subr.bf16.mxu0 0
    %479 = vmatpush1.bf16.msra.mxu0 0
    %480 = vmatprep.subr.bf16.mxu0 0
    %481 = vmatpush1.bf16.msra.mxu0 0
    %482 = vmatprep.subr.bf16.mxu0 0
    %483 = vmatpush1.bf16.msra.mxu0 0
    %484 = vmatprep.subr.bf16.mxu0 0
    %485 = vmatpush1.bf16.msra.mxu0 0
    %486 = vmatprep.subr.bf16.mxu0 0
    %487 = vmatpush1.bf16.msra.mxu0 0
    %488 = vmatprep.subr.bf16.mxu0 0
    %489 = vmatpush1.bf16.msra.mxu0 0
    %490 = vmatprep.mubr.bf16.mxu0 0
    %491 = vmatmul.mubr.bf16.gmra.mrb[0].mxu0 %v450
    %v492 = vpop.f32.mrb[0].mxu0
    %v493 = vadd.f32 0.0, %v492
    %v494 = vpop.f32.mrb[0].mxu0
    %v495 = vadd.f32 0.0, %v494
    %v496 = vpop.f32.mrb[0].mxu0
    %v497 = vpop.f32.mrb[0].mxu0
    %498 = vdwg.mxu0
    %v499 = vstv %s127
    %v500 = vmul.f32 %v493, %v499
    %v501 = vmul.f32 %v495, %v499
    %v502 = vadd.f32 %v435, %v500
    %v503 = vadd.f32 %v436, %v501
    %v504 = vld [vmem:[%s8] sm:$0x3]
    %v506 = vlaneseq
    %v507 = vshrl.u32 %v506, 7
    %v508 = vsub.s32 0, %v507
    %v509 = vrot.slane %v504, %v508
    %v510 = vlaneseq
    %v511 = vshrl.u32 %v510, 7
    %v512 = vsub.s32 1, %v511
    %v513 = vrot.slane %v504, %v512
    %v516 = vadd.f32 %v502, %v509
    %v517 = vadd.f32 %v503, %v513
    %v518 = vmax.f32 %v516, 0.0
    %v519 = vmax.f32 %v517, 0.0
    %v520 = vpack.c.bf16 %v518, %v518
    %v521 = vpack.c.bf16 %v519, %v519
    %v522 = vld [vmem:[#allocation6] sm:$0xf]
    %v523 = vld [vmem:[#allocation6 + $0x4] sm:$0xf]
    %v524 = vld [vmem:[#allocation6 + $0x8] sm:$0xf]
    %v525 = vld [vmem:[#allocation6 + $0xc] sm:$0xf]
    %v526 = vld [vmem:[#allocation6 + $0x10] sm:$0xf]
    %v527 = vld [vmem:[#allocation6 + $0x14] sm:$0xf]
    %v528 = vld [vmem:[#allocation6 + $0x18] sm:$0xf]
    %v529 = vld [vmem:[#allocation6 + $0x1c] sm:$0xf]
    %v530 = vld [vmem:[#allocation6 + $0x20] sm:$0xf]
    %v531 = vld [vmem:[#allocation6 + $0x24] sm:$0xf]
    %v532 = vld [vmem:[#allocation6 + $0x28] sm:$0xf]
    %v533 = vld [vmem:[#allocation6 + $0x2c] sm:$0xf]
    %v534 = vld [vmem:[#allocation6 + $0x30] sm:$0xf]
    %v535 = vld [vmem:[#allocation6 + $0x34] sm:$0xf]
    %v536 = vld [vmem:[#allocation6 + $0x38] sm:$0xf]
    %v537 = vld [vmem:[#allocation6 + $0x3c] sm:$0xf]
    %v538 = vld [vmem:[#allocation6 + $0x40] sm:$0xf]
    %v539 = vld [vmem:[#allocation6 + $0x44] sm:$0xf]
    %v540 = vld [vmem:[#allocation6 + $0x48] sm:$0xf]
    %v541 = vld [vmem:[#allocation6 + $0x4c] sm:$0xf]
    %v542 = vld [vmem:[#allocation6 + $0x50] sm:$0xf]
    %v543 = vld [vmem:[#allocation6 + $0x54] sm:$0xf]
    %v544 = vld [vmem:[#allocation6 + $0x58] sm:$0xf]
    %v545 = vld [vmem:[#allocation6 + $0x5c] sm:$0xf]
    %v546 = vld [vmem:[#allocation6 + $0x60] sm:$0xf]
    %v547 = vld [vmem:[#allocation6 + $0x64] sm:$0xf]
    %v548 = vld [vmem:[#allocation6 + $0x68] sm:$0xf]
    %v549 = vld [vmem:[#allocation6 + $0x6c] sm:$0xf]
    %v550 = vld [vmem:[#allocation6 + $0x70] sm:$0xf]
    %v551 = vld [vmem:[#allocation6 + $0x74] sm:$0xf]
    %v552 = vld [vmem:[#allocation6 + $0x78] sm:$0xf]
    %v553 = vld [vmem:[#allocation6 + $0x7c] sm:$0xf]
    %v554 = vld [vmem:[%s10] sm:$0x1]
    %v556 = vlaneseq
    %v557 = vshrl.u32 %v556, 7
    %v558 = vsub.s32 0, %v557
    %v559 = vrot.slane %v554, %v558
    %v593 = vunpack.c.l.b16 %v522
    %v594 = vunpack.c.l.b16 %v523
    %v595 = vunpack.c.l.b16 %v524
    %v596 = vunpack.c.l.b16 %v525
    %v597 = vunpack.c.l.b16 %v526
    %v598 = vunpack.c.l.b16 %v527
    %v599 = vunpack.c.l.b16 %v528
    %v600 = vunpack.c.l.b16 %v529
    %v601 = vunpack.c.l.b16 %v530
    %v602 = vunpack.c.l.b16 %v531
    %v603 = vunpack.c.l.b16 %v532
    %v604 = vunpack.c.l.b16 %v533
    %v605 = vunpack.c.l.b16 %v534
    %v606 = vunpack.c.l.b16 %v535
    %v607 = vunpack.c.l.b16 %v536
    %v608 = vunpack.c.l.b16 %v537
    %v609 = vunpack.c.l.b16 %v538
    %v610 = vunpack.c.l.b16 %v539
    %v611 = vunpack.c.l.b16 %v540
    %v612 = vunpack.c.l.b16 %v541
    %v613 = vunpack.c.l.b16 %v542
    %v614 = vunpack.c.l.b16 %v543
    %v615 = vunpack.c.l.b16 %v544
    %v616 = vunpack.c.l.b16 %v545
    %v617 = vunpack.c.l.b16 %v546
    %v618 = vunpack.c.l.b16 %v547
    %v619 = vunpack.c.l.b16 %v548
    %v620 = vunpack.c.l.b16 %v549
    %v621 = vunpack.c.l.b16 %v550
    %v622 = vunpack.c.l.b16 %v551
    %v623 = vunpack.c.l.b16 %v552
    %v624 = vunpack.c.l.b16 %v553
    %v625 = vpack.c.b16 %v594, %v593
    %v626 = vpack.c.b16 %v596, %v595
    %v627 = vpack.c.b16 %v598, %v597
    %v628 = vpack.c.b16 %v600, %v599
    %v629 = vpack.c.b16 %v602, %v601
    %v630 = vpack.c.b16 %v604, %v603
    %v631 = vpack.c.b16 %v606, %v605
    %v632 = vpack.c.b16 %v608, %v607
    %v633 = vpack.c.b16 %v610, %v609
    %v634 = vpack.c.b16 %v612, %v611
    %v635 = vpack.c.b16 %v614, %v613
    %v636 = vpack.c.b16 %v616, %v615
    %v637 = vpack.c.b16 %v618, %v617
    %v638 = vpack.c.b16 %v620, %v619
    %v639 = vpack.c.b16 %v622, %v621
    %v640 = vpack.c.b16 %v624, %v623
    %657 = vmatprep.subr.bf16.mxu0 0
    %658 = vmatpush1.bf16.msra.mxu0 %v625
    %659 = vmatprep.subr.bf16.mxu0 0
    %660 = vmatpush1.bf16.msra.mxu0 %v626
    %661 = vmatprep.subr.bf16.mxu0 0
    %662 = vmatpush1.bf16.msra.mxu0 %v627
    %663 = vmatprep.subr.bf16.mxu0 0
    %664 = vmatpush1.bf16.msra.mxu0 %v628
    %665 = vmatprep.subr.bf16.mxu0 0
    %666 = vmatpush1.bf16.msra.mxu0 %v629
    %667 = vmatprep.subr.bf16.mxu0 0
    %668 = vmatpush1.bf16.msra.mxu0 %v630
    %669 = vmatprep.subr.bf16.mxu0 0
    %670 = vmatpush1.bf16.msra.mxu0 %v631
    %671 = vmatprep.subr.bf16.mxu0 0
    %672 = vmatpush1.bf16.msra.mxu0 %v632
    %673 = vmatprep.subr.bf16.mxu0 0
    %674 = vmatpush1.bf16.msra.mxu0 %v633
    %675 = vmatprep.subr.bf16.mxu0 0
    %676 = vmatpush1.bf16.msra.mxu0 %v634
    %677 = vmatprep.subr.bf16.mxu0 0
    %678 = vmatpush1.bf16.msra.mxu0 %v635
    %679 = vmatprep.subr.bf16.mxu0 0
    %680 = vmatpush1.bf16.msra.mxu0 %v636
    %681 = vmatprep.subr.bf16.mxu0 0
    %682 = vmatpush1.bf16.msra.mxu0 %v637
    %683 = vmatprep.subr.bf16.mxu0 0
    %684 = vmatpush1.bf16.msra.mxu0 %v638
    %685 = vmatprep.subr.bf16.mxu0 0
    %686 = vmatpush1.bf16.msra.mxu0 %v639
    %687 = vmatprep.subr.bf16.mxu0 0
    %688 = vmatpush1.bf16.msra.mxu0 %v640
    %689 = vmatprep.mubr.bf16.mxu0 %v521
    %690 = vmatmul.mubr.bf16.gmra.mrb[0].mxu0 %v520
    %v691 = vpop.f32.mrb[0].mxu0
    %v692 = vadd.f32 %v559, %v691
    %v693 = vpop.f32.mrb[0].mxu0
    %v694 = vpop.f32.mrb[0].mxu0
    %v695 = vpop.f32.mrb[0].mxu0
    %696 = vdwg.mxu0
    %v697 = vmax.f32 %v692, 0.0
    %v698 = vpack.c.bf16 %v697, %v697
    %v699 = vld [vmem:[%s11] sm:$0xf]
    %v700 = vld [vmem:[%s11 + $0x4] sm:$0xf]
    %v701 = vld [vmem:[%s11 + $0x8] sm:$0xf]
    %v702 = vld [vmem:[%s11 + $0xc] sm:$0xf]
    %v703 = vld [vmem:[%s11 + $0x10] sm:$0xf]
    %v704 = vld [vmem:[%s11 + $0x14] sm:$0xf]
    %v705 = vld [vmem:[%s11 + $0x18] sm:$0xf]
    %v706 = vld [vmem:[%s11 + $0x1c] sm:$0xf]
    %v707 = vld [vmem:[%s11 + $0x20] sm:$0xf]
    %v708 = vld [vmem:[%s11 + $0x24] sm:$0xf]
    %v709 = vld [vmem:[%s11 + $0x28] sm:$0xf]
    %v710 = vld [vmem:[%s11 + $0x2c] sm:$0xf]
    %v711 = vld [vmem:[%s11 + $0x30] sm:$0xf]
    %v712 = vld [vmem:[%s11 + $0x34] sm:$0xf]
    %v713 = vld [vmem:[%s11 + $0x38] sm:$0xf]
    %v714 = vld [vmem:[%s11 + $0x3c] sm:$0xf]
    %v715 = vld [vmem:[%s12] sm:$0x1]
    %v717 = vlaneseq
    %v718 = vshrl.u32 %v717, 7
    %v719 = vsub.s32 0, %v718
    %v720 = vrot.slane %v715, %v719
    %v738 = vunpack.c.l.b16 %v699
    %v739 = vunpack.c.l.b16 %v700
    %v740 = vunpack.c.l.b16 %v701
    %v741 = vunpack.c.l.b16 %v702
    %v742 = vunpack.c.l.b16 %v703
    %v743 = vunpack.c.l.b16 %v704
    %v744 = vunpack.c.l.b16 %v705
    %v745 = vunpack.c.l.b16 %v706
    %v746 = vunpack.c.l.b16 %v707
    %v747 = vunpack.c.l.b16 %v708
    %v748 = vunpack.c.l.b16 %v709
    %v749 = vunpack.c.l.b16 %v710
    %v750 = vunpack.c.l.b16 %v711
    %v751 = vunpack.c.l.b16 %v712
    %v752 = vunpack.c.l.b16 %v713
    %v753 = vunpack.c.l.b16 %v714
    %v754 = vpack.c.b16 %v739, %v738
    %v755 = vpack.c.b16 %v741, %v740
    %v756 = vpack.c.b16 %v743, %v742
    %v757 = vpack.c.b16 %v745, %v744
    %v758 = vpack.c.b16 %v747, %v746
    %v759 = vpack.c.b16 %v749, %v748
    %v760 = vpack.c.b16 %v751, %v750
    %v761 = vpack.c.b16 %v753, %v752
    %770 = vmatprep.subr.bf16.mxu0 0
    %771 = vmatpush1.bf16.msra.mxu0 %v754
    %772 = vmatprep.subr.bf16.mxu0 0
    %773 = vmatpush1.bf16.msra.mxu0 %v755
    %774 = vmatprep.subr.bf16.mxu0 0
    %775 = vmatpush1.bf16.msra.mxu0 %v756
    %776 = vmatprep.subr.bf16.mxu0 0
    %777 = vmatpush1.bf16.msra.mxu0 %v757
    %778 = vmatprep.subr.bf16.mxu0 0
    %779 = vmatpush1.bf16.msra.mxu0 %v758
    %780 = vmatprep.subr.bf16.mxu0 0
    %781 = vmatpush1.bf16.msra.mxu0 %v759
    %782 = vmatprep.subr.bf16.mxu0 0
    %783 = vmatpush1.bf16.msra.mxu0 %v760
    %784 = vmatprep.subr.bf16.mxu0 0
    %785 = vmatpush1.bf16.msra.mxu0 %v761
    %786 = vmatprep.subr.bf16.mxu0 0
    %787 = vmatpush1.bf16.msra.mxu0 0
    %788 = vmatprep.subr.bf16.mxu0 0
    %789 = vmatpush1.bf16.msra.mxu0 0
    %790 = vmatprep.subr.bf16.mxu0 0
    %791 = vmatpush1.bf16.msra.mxu0 0
    %792 = vmatprep.subr.bf16.mxu0 0
    %793 = vmatpush1.bf16.msra.mxu0 0
    %794 = vmatprep.subr.bf16.mxu0 0
    %795 = vmatpush1.bf16.msra.mxu0 0
    %796 = vmatprep.subr.bf16.mxu0 0
    %797 = vmatpush1.bf16.msra.mxu0 0
    %798 = vmatprep.subr.bf16.mxu0 0
    %799 = vmatpush1.bf16.msra.mxu0 0
    %800 = vmatprep.subr.bf16.mxu0 0
    %801 = vmatpush1.bf16.msra.mxu0 0
    %802 = vmatprep.mubr.bf16.mxu0 0
    %803 = vmatmul.mubr.bf16.gmra.mrb[0].mxu0 %v698
    %v804 = vpop.f32.mrb[0].mxu0
    %v805 = vadd.f32 %v720, %v804
    %v806 = vpop.f32.mrb[0].mxu0
    %v807 = vpop.f32.mrb[0].mxu0
    %v808 = vpop.f32.mrb[0].mxu0
    %809 = vdwg.mxu0
    %v810 = vmax.f32 %v805, 0.0
    %v811 = vpack.c.bf16 %v810, %v810
    %v812 = vld [vmem:[#allocation8] sm:$0xff]
    %v813 = vld [vmem:[#allocation8 + $0x8] sm:$0xff]
    %v814 = vld [vmem:[#allocation8 + $0x10] sm:$0xff]
    %v815 = vld [vmem:[#allocation8 + $0x18] sm:$0xff]
    %v816 = vld [vmem:[#allocation8 + $0x20] sm:$0xff]
    %v817 = vld [vmem:[#allocation8 + $0x28] sm:$0xff]
    %v818 = vld [vmem:[#allocation8 + $0x30] sm:$0xff]
    %v819 = vld [vmem:[#allocation8 + $0x38] sm:$0xff]
    %v820 = vld [vmem:[#allocation8 + $0x40] sm:$0xff]
    %v821 = vld [vmem:[#allocation8 + $0x48] sm:$0xff]
    %v822 = vld [vmem:[#allocation8 + $0x50] sm:$0xff]
    %v823 = vld [vmem:[#allocation8 + $0x58] sm:$0xff]
    %v824 = vld [vmem:[#allocation8 + $0x60] sm:$0xff]
    %v825 = vld [vmem:[#allocation8 + $0x68] sm:$0xff]
    %v826 = vld [vmem:[#allocation8 + $0x70] sm:$0xff]
    %v827 = vld [vmem:[#allocation8 + $0x78] sm:$0xff]
    %v828 = vld [vmem:[#allocation8 + $0x80] sm:$0xff]
    %v829 = vld [vmem:[#allocation8 + $0x88] sm:$0xff]
    %v830 = vld [vmem:[#allocation8 + $0x90] sm:$0xff]
    %v831 = vld [vmem:[#allocation8 + $0x98] sm:$0xff]
    %v832 = vld [vmem:[#allocation8 + $0xa0] sm:$0xff]
    %v833 = vld [vmem:[#allocation8 + $0xa8] sm:$0xff]
    %v834 = vld [vmem:[#allocation8 + $0xb0] sm:$0xff]
    %v835 = vld [vmem:[#allocation8 + $0xb8] sm:$0xff]
    %v836 = vld [vmem:[#allocation8 + $0xc0] sm:$0xff]
    %v837 = vld [vmem:[#allocation8 + $0xc8] sm:$0xff]
    %v838 = vld [vmem:[#allocation8 + $0xd0] sm:$0xff]
    %v839 = vld [vmem:[#allocation8 + $0xd8] sm:$0xff]
    %v840 = vld [vmem:[#allocation8 + $0xe0] sm:$0xff]
    %v841 = vld [vmem:[#allocation8 + $0xe8] sm:$0xff]
    %v842 = vld [vmem:[#allocation8 + $0xf0] sm:$0xff]
    %v843 = vld [vmem:[#allocation8 + $0xf8] sm:$0xff]
    %v844 = vld [vmem:[#allocation8 + $0x100] sm:$0xff]
    %v845 = vld [vmem:[#allocation8 + $0x108] sm:$0xff]
    %v846 = vld [vmem:[#allocation8 + $0x110] sm:$0xff]
    %v847 = vld [vmem:[#allocation8 + $0x118] sm:$0xff]
    %v848 = vld [vmem:[#allocation8 + $0x120] sm:$0xff]
    %v849 = vld [vmem:[#allocation8 + $0x128] sm:$0xff]
    %v850 = vld [vmem:[#allocation8 + $0x130] sm:$0xff]
    %v851 = vld [vmem:[#allocation8 + $0x138] sm:$0xff]
    %v852 = vld [vmem:[#allocation8 + $0x140] sm:$0xff]
    %v853 = vld [vmem:[#allocation8 + $0x148] sm:$0xff]
    %v854 = vld [vmem:[#allocation8 + $0x150] sm:$0xff]
    %v855 = vld [vmem:[#allocation8 + $0x158] sm:$0xff]
    %v856 = vld [vmem:[#allocation8 + $0x160] sm:$0xff]
    %v857 = vld [vmem:[#allocation8 + $0x168] sm:$0xff]
    %v858 = vld [vmem:[#allocation8 + $0x170] sm:$0xff]
    %v859 = vld [vmem:[#allocation8 + $0x178] sm:$0xff]
    %v860 = vld [vmem:[#allocation8 + $0x180] sm:$0xff]
    %v861 = vld [vmem:[#allocation8 + $0x188] sm:$0xff]
    %v862 = vld [vmem:[#allocation8 + $0x190] sm:$0xff]
    %v863 = vld [vmem:[#allocation8 + $0x198] sm:$0xff]
    %v864 = vld [vmem:[#allocation8 + $0x1a0] sm:$0xff]
    %v865 = vld [vmem:[#allocation8 + $0x1a8] sm:$0xff]
    %v866 = vld [vmem:[#allocation8 + $0x1b0] sm:$0xff]
    %v867 = vld [vmem:[#allocation8 + $0x1b8] sm:$0xff]
    %v868 = vld [vmem:[#allocation8 + $0x1c0] sm:$0xff]
    %v869 = vld [vmem:[#allocation8 + $0x1c8] sm:$0xff]
    %v870 = vld [vmem:[#allocation8 + $0x1d0] sm:$0xff]
    %v871 = vld [vmem:[#allocation8 + $0x1d8] sm:$0xff]
    %v872 = vld [vmem:[#allocation8 + $0x1e0] sm:$0xff]
    %v873 = vld [vmem:[#allocation8 + $0x1e8] sm:$0xff]
    %v874 = vld [vmem:[#allocation8 + $0x1f0] sm:$0xff]
    %v875 = vld [vmem:[#allocation8 + $0x1f8] sm:$0xff]
    %v876 = vld [vmem:[%s14] sm:$0xff]
    %v878 = vlaneseq
    %v879 = vshrl.u32 %v878, 7
    %v880 = vsub.s32 0, %v879
    %v881 = vrot.slane %v876, %v880
    %v882 = vlaneseq
    %v883 = vshrl.u32 %v882, 7
    %v884 = vsub.s32 1, %v883
    %v885 = vrot.slane %v876, %v884
    %v886 = vlaneseq
    %v887 = vshrl.u32 %v886, 7
    %v888 = vsub.s32 2, %v887
    %v889 = vrot.slane %v876, %v888
    %v890 = vlaneseq
    %v891 = vshrl.u32 %v890, 7
    %v892 = vsub.s32 3, %v891
    %v893 = vrot.slane %v876, %v892
    %v894 = vlaneseq
    %v895 = vshrl.u32 %v894, 7
    %v896 = vsub.s32 4, %v895
    %v897 = vrot.slane %v876, %v896
    %v898 = vlaneseq
    %v899 = vshrl.u32 %v898, 7
    %v900 = vsub.s32 5, %v899
    %v901 = vrot.slane %v876, %v900
    %v902 = vlaneseq
    %v903 = vshrl.u32 %v902, 7
    %v904 = vsub.s32 6, %v903
    %v905 = vrot.slane %v876, %v904
    %v906 = vlaneseq
    %v907 = vshrl.u32 %v906, 7
    %v908 = vsub.s32 7, %v907
    %v909 = vrot.slane %v876, %v908
    %v982 = vunpack.c.l.b16 %v812
    %v983 = vunpack.c.h.b16 %v812
    %v984 = vunpack.c.l.b16 %v813
    %v985 = vunpack.c.h.b16 %v813
    %v986 = vunpack.c.l.b16 %v814
    %v987 = vunpack.c.h.b16 %v814
    %v988 = vunpack.c.l.b16 %v815
    %v989 = vunpack.c.h.b16 %v815
    %v990 = vunpack.c.l.b16 %v816
    %v991 = vunpack.c.h.b16 %v816
    %v992 = vunpack.c.l.b16 %v817
    %v993 = vunpack.c.h.b16 %v817
    %v994 = vunpack.c.l.b16 %v818
    %v995 = vunpack.c.h.b16 %v818
    %v996 = vunpack.c.l.b16 %v819
    %v997 = vunpack.c.h.b16 %v819
    %v998 = vunpack.c.l.b16 %v820
    %v999 = vunpack.c.h.b16 %v820
    %v1000 = vunpack.c.l.b16 %v821
    %v1001 = vunpack.c.h.b16 %v821
    %v1002 = vunpack.c.l.b16 %v822
    %v1003 = vunpack.c.h.b16 %v822
    %v1004 = vunpack.c.l.b16 %v823
    %v1005 = vunpack.c.h.b16 %v823
    %v1006 = vunpack.c.l.b16 %v824
    %v1007 = vunpack.c.h.b16 %v824
    %v1008 = vunpack.c.l.b16 %v825
    %v1009 = vunpack.c.h.b16 %v825
    %v1010 = vunpack.c.l.b16 %v826
    %v1011 = vunpack.c.h.b16 %v826
    %v1012 = vunpack.c.l.b16 %v827
    %v1013 = vunpack.c.h.b16 %v827
    %v1014 = vunpack.c.l.b16 %v828
    %v1015 = vunpack.c.h.b16 %v828
    %v1016 = vunpack.c.l.b16 %v829
    %v1017 = vunpack.c.h.b16 %v829
    %v1018 = vunpack.c.l.b16 %v830
    %v1019 = vunpack.c.h.b16 %v830
    %v1020 = vunpack.c.l.b16 %v831
    %v1021 = vunpack.c.h.b16 %v831
    %v1022 = vunpack.c.l.b16 %v832
    %v1023 = vunpack.c.h.b16 %v832
    %v1024 = vunpack.c.l.b16 %v833
    %v1025 = vunpack.c.h.b16 %v833
    %v1026 = vunpack.c.l.b16 %v834
    %v1027 = vunpack.c.h.b16 %v834
    %v1028 = vunpack.c.l.b16 %v835
    %v1029 = vunpack.c.h.b16 %v835
    %v1030 = vunpack.c.l.b16 %v836
    %v1031 = vunpack.c.h.b16 %v836
    %v1032 = vunpack.c.l.b16 %v837
    %v1033 = vunpack.c.h.b16 %v837
    %v1034 = vunpack.c.l.b16 %v838
    %v1035 = vunpack.c.h.b16 %v838
    %v1036 = vunpack.c.l.b16 %v839
    %v1037 = vunpack.c.h.b16 %v839
    %v1038 = vunpack.c.l.b16 %v840
    %v1039 = vunpack.c.h.b16 %v840
    %v1040 = vunpack.c.l.b16 %v841
    %v1041 = vunpack.c.h.b16 %v841
    %v1042 = vunpack.c.l.b16 %v842
    %v1043 = vunpack.c.h.b16 %v842
    %v1044 = vunpack.c.l.b16 %v843
    %v1045 = vunpack.c.h.b16 %v843
    %v1046 = vunpack.c.l.b16 %v844
    %v1047 = vunpack.c.h.b16 %v844
    %v1048 = vunpack.c.l.b16 %v845
    %v1049 = vunpack.c.h.b16 %v845
    %v1050 = vunpack.c.l.b16 %v846
    %v1051 = vunpack.c.h.b16 %v846
    %v1052 = vunpack.c.l.b16 %v847
    %v1053 = vunpack.c.h.b16 %v847
    %v1054 = vunpack.c.l.b16 %v848
    %v1055 = vunpack.c.h.b16 %v848
    %v1056 = vunpack.c.l.b16 %v849
    %v1057 = vunpack.c.h.b16 %v849
    %v1058 = vunpack.c.l.b16 %v850
    %v1059 = vunpack.c.h.b16 %v850
    %v1060 = vunpack.c.l.b16 %v851
    %v1061 = vunpack.c.h.b16 %v851
    %v1062 = vunpack.c.l.b16 %v852
    %v1063 = vunpack.c.h.b16 %v852
    %v1064 = vunpack.c.l.b16 %v853
    %v1065 = vunpack.c.h.b16 %v853
    %v1066 = vunpack.c.l.b16 %v854
    %v1067 = vunpack.c.h.b16 %v854
    %v1068 = vunpack.c.l.b16 %v855
    %v1069 = vunpack.c.h.b16 %v855
    %v1070 = vunpack.c.l.b16 %v856
    %v1071 = vunpack.c.h.b16 %v856
    %v1072 = vunpack.c.l.b16 %v857
    %v1073 = vunpack.c.h.b16 %v857
    %v1074 = vunpack.c.l.b16 %v858
    %v1075 = vunpack.c.h.b16 %v858
    %v1076 = vunpack.c.l.b16 %v859
    %v1077 = vunpack.c.h.b16 %v859
    %v1078 = vunpack.c.l.b16 %v860
    %v1079 = vunpack.c.h.b16 %v860
    %v1080 = vunpack.c.l.b16 %v861
    %v1081 = vunpack.c.h.b16 %v861
    %v1082 = vunpack.c.l.b16 %v862
    %v1083 = vunpack.c.h.b16 %v862
    %v1084 = vunpack.c.l.b16 %v863
    %v1085 = vunpack.c.h.b16 %v863
    %v1086 = vunpack.c.l.b16 %v864
    %v1087 = vunpack.c.h.b16 %v864
    %v1088 = vunpack.c.l.b16 %v865
    %v1089 = vunpack.c.h.b16 %v865
    %v1090 = vunpack.c.l.b16 %v866
    %v1091 = vunpack.c.h.b16 %v866
    %v1092 = vunpack.c.l.b16 %v867
    %v1093 = vunpack.c.h.b16 %v867
    %v1094 = vunpack.c.l.b16 %v868
    %v1095 = vunpack.c.h.b16 %v868
    %v1096 = vunpack.c.l.b16 %v869
    %v1097 = vunpack.c.h.b16 %v869
    %v1098 = vunpack.c.l.b16 %v870
    %v1099 = vunpack.c.h.b16 %v870
    %v1100 = vunpack.c.l.b16 %v871
    %v1101 = vunpack.c.h.b16 %v871
    %v1102 = vunpack.c.l.b16 %v872
    %v1103 = vunpack.c.h.b16 %v872
    %v1104 = vunpack.c.l.b16 %v873
    %v1105 = vunpack.c.h.b16 %v873
    %v1106 = vunpack.c.l.b16 %v874
    %v1107 = vunpack.c.h.b16 %v874
    %v1108 = vunpack.c.l.b16 %v875
    %v1109 = vunpack.c.h.b16 %v875
    %v1110 = vpack.c.b16 %v990, %v982
    %v1111 = vpack.c.b16 %v991, %v983
    %v1112 = vpack.c.b16 %v992, %v984
    %v1113 = vpack.c.b16 %v993, %v985
    %v1114 = vpack.c.b16 %v994, %v986
    %v1115 = vpack.c.b16 %v995, %v987
    %v1116 = vpack.c.b16 %v996, %v988
    %v1117 = vpack.c.b16 %v997, %v989
    %v1118 = vpack.c.b16 %v1006, %v998
    %v1119 = vpack.c.b16 %v1007, %v999
    %v1120 = vpack.c.b16 %v1008, %v1000
    %v1121 = vpack.c.b16 %v1009, %v1001
    %v1122 = vpack.c.b16 %v1010, %v1002
    %v1123 = vpack.c.b16 %v1011, %v1003
    %v1124 = vpack.c.b16 %v1012, %v1004
    %v1125 = vpack.c.b16 %v1013, %v1005
    %v1126 = vpack.c.b16 %v1022, %v1014
    %v1127 = vpack.c.b16 %v1023, %v1015
    %v1128 = vpack.c.b16 %v1024, %v1016
    %v1129 = vpack.c.b16 %v1025, %v1017
    %v1130 = vpack.c.b16 %v1026, %v1018
    %v1131 = vpack.c.b16 %v1027, %v1019
    %v1132 = vpack.c.b16 %v1028, %v1020
    %v1133 = vpack.c.b16 %v1029, %v1021
    %v1134 = vpack.c.b16 %v1038, %v1030
    %v1135 = vpack.c.b16 %v1039, %v1031
    %v1136 = vpack.c.b16 %v1040, %v1032
    %v1137 = vpack.c.b16 %v1041, %v1033
    %v1138 = vpack.c.b16 %v1042, %v1034
    %v1139 = vpack.c.b16 %v1043, %v1035
    %v1140 = vpack.c.b16 %v1044, %v1036
    %v1141 = vpack.c.b16 %v1045, %v1037
    %v1142 = vpack.c.b16 %v1054, %v1046
    %v1143 = vpack.c.b16 %v1055, %v1047
    %v1144 = vpack.c.b16 %v1056, %v1048
    %v1145 = vpack.c.b16 %v1057, %v1049
    %v1146 = vpack.c.b16 %v1058, %v1050
    %v1147 = vpack.c.b16 %v1059, %v1051
    %v1148 = vpack.c.b16 %v1060, %v1052
    %v1149 = vpack.c.b16 %v1061, %v1053
    %v1150 = vpack.c.b16 %v1070, %v1062
    %v1151 = vpack.c.b16 %v1071, %v1063
    %v1152 = vpack.c.b16 %v1072, %v1064
    %v1153 = vpack.c.b16 %v1073, %v1065
    %v1154 = vpack.c.b16 %v1074, %v1066
    %v1155 = vpack.c.b16 %v1075, %v1067
    %v1156 = vpack.c.b16 %v1076, %v1068
    %v1157 = vpack.c.b16 %v1077, %v1069
    %v1158 = vpack.c.b16 %v1086, %v1078
    %v1159 = vpack.c.b16 %v1087, %v1079
    %v1160 = vpack.c.b16 %v1088, %v1080
    %v1161 = vpack.c.b16 %v1089, %v1081
    %v1162 = vpack.c.b16 %v1090, %v1082
    %v1163 = vpack.c.b16 %v1091, %v1083
    %v1164 = vpack.c.b16 %v1092, %v1084
    %v1165 = vpack.c.b16 %v1093, %v1085
    %v1166 = vpack.c.b16 %v1102, %v1094
    %v1167 = vpack.c.b16 %v1103, %v1095
    %v1168 = vpack.c.b16 %v1104, %v1096
    %v1169 = vpack.c.b16 %v1105, %v1097
    %v1170 = vpack.c.b16 %v1106, %v1098
    %v1171 = vpack.c.b16 %v1107, %v1099
    %v1172 = vpack.c.b16 %v1108, %v1100
    %v1173 = vpack.c.b16 %v1109, %v1101
    %1238 = vmatprep.subr.bf16.mxu0 %v1111
    %1239 = vmatpush1.bf16.msra.mxu0 %v1110
    %1240 = vmatprep.subr.bf16.mxu0 %v1119
    %1241 = vmatpush1.bf16.msra.mxu0 %v1118
    %1242 = vmatprep.subr.bf16.mxu0 %v1127
    %1243 = vmatpush1.bf16.msra.mxu0 %v1126
    %1244 = vmatprep.subr.bf16.mxu0 %v1135
    %1245 = vmatpush1.bf16.msra.mxu0 %v1134
    %1246 = vmatprep.subr.bf16.mxu0 %v1143
    %1247 = vmatpush1.bf16.msra.mxu0 %v1142
    %1248 = vmatprep.subr.bf16.mxu0 %v1151
    %1249 = vmatpush1.bf16.msra.mxu0 %v1150
    %1250 = vmatprep.subr.bf16.mxu0 %v1159
    %1251 = vmatpush1.bf16.msra.mxu0 %v1158
    %1252 = vmatprep.subr.bf16.mxu0 %v1167
    %1253 = vmatpush1.bf16.msra.mxu0 %v1166
    %1254 = vmatprep.subr.bf16.mxu0 0
    %1255 = vmatpush1.bf16.msra.mxu0 0
    %1256 = vmatprep.subr.bf16.mxu0 0
    %1257 = vmatpush1.bf16.msra.mxu0 0
    %1258 = vmatprep.subr.bf16.mxu0 0
    %1259 = vmatpush1.bf16.msra.mxu0 0
    %1260 = vmatprep.subr.bf16.mxu0 0
    %1261 = vmatpush1.bf16.msra.mxu0 0
    %1262 = vmatprep.subr.bf16.mxu0 0
    %1263 = vmatpush1.bf16.msra.mxu0 0
    %1264 = vmatprep.subr.bf16.mxu0 0
    %1265 = vmatpush1.bf16.msra.mxu0 0
    %1266 = vmatprep.subr.bf16.mxu0 0
    %1267 = vmatpush1.bf16.msra.mxu0 0
    %1268 = vmatprep.subr.bf16.mxu0 0
    %1269 = vmatpush1.bf16.msra.mxu0 0
    %1270 = vmatprep.mubr.bf16.mxu0 0
    %1271 = vmatmul.mubr.bf16.gmra.mrb[0].mxu0 %v811
    %v1272 = vpop.f32.mrb[0].mxu0
    %v1273 = vadd.f32 %v881, %v1272
    %v1274 = vpop.f32.mrb[0].mxu0
    %v1275 = vadd.f32 %v885, %v1274
    %v1276 = vpop.f32.mrb[0].mxu0
    %v1277 = vpop.f32.mrb[0].mxu0
    %1278 = vdwg.mxu0
    %1279 = vmatprep.subr.bf16.mxu0 %v1113
    %1280 = vmatpush1.bf16.msra.mxu0 %v1112
    %1281 = vmatprep.subr.bf16.mxu0 %v1121
    %1282 = vmatpush1.bf16.msra.mxu0 %v1120
    %1283 = vmatprep.subr.bf16.mxu0 %v1129
    %1284 = vmatpush1.bf16.msra.mxu0 %v1128
    %1285 = vmatprep.subr.bf16.mxu0 %v1137
    %1286 = vmatpush1.bf16.msra.mxu0 %v1136
    %1287 = vmatprep.subr.bf16.mxu0 %v1145
    %1288 = vmatpush1.bf16.msra.mxu0 %v1144
    %1289 = vmatprep.subr.bf16.mxu0 %v1153
    %1290 = vmatpush1.bf16.msra.mxu0 %v1152
    %1291 = vmatprep.subr.bf16.mxu0 %v1161
    %1292 = vmatpush1.bf16.msra.mxu0 %v1160
    %1293 = vmatprep.subr.bf16.mxu0 %v1169
    %1294 = vmatpush1.bf16.msra.mxu0 %v1168
    %1295 = vmatprep.subr.bf16.mxu0 0
    %1296 = vmatpush1.bf16.msra.mxu0 0
    %1297 = vmatprep.subr.bf16.mxu0 0
    %1298 = vmatpush1.bf16.msra.mxu0 0
    %1299 = vmatprep.subr.bf16.mxu0 0
    %1300 = vmatpush1.bf16.msra.mxu0 0
    %1301 = vmatprep.subr.bf16.mxu0 0
    %1302 = vmatpush1.bf16.msra.mxu0 0
    %1303 = vmatprep.subr.bf16.mxu0 0
    %1304 = vmatpush1.bf16.msra.mxu0 0
    %1305 = vmatprep.subr.bf16.mxu0 0
    %1306 = vmatpush1.bf16.msra.mxu0 0
    %1307 = vmatprep.subr.bf16.mxu0 0
    %1308 = vmatpush1.bf16.msra.mxu0 0
    %1309 = vmatprep.subr.bf16.mxu0 0
    %1310 = vmatpush1.bf16.msra.mxu0 0
    %1311 = vmatprep.mubr.bf16.mxu0 0
    %1312 = vmatmul.mubr.bf16.gmra.mrb[0].mxu0 %v811
    %v1313 = vpop.f32.mrb[0].mxu0
    %v1314 = vadd.f32 %v889, %v1313
    %v1315 = vpop.f32.mrb[0].mxu0
    %v1316 = vadd.f32 %v893, %v1315
    %v1317 = vpop.f32.mrb[0].mxu0
    %v1318 = vpop.f32.mrb[0].mxu0
    %1319 = vdwg.mxu0
    %1320 = vmatprep.subr.bf16.mxu0 %v1115
    %1321 = vmatpush1.bf16.msra.mxu0 %v1114
    %1322 = vmatprep.subr.bf16.mxu0 %v1123
    %1323 = vmatpush1.bf16.msra.mxu0 %v1122
    %1324 = vmatprep.subr.bf16.mxu0 %v1131
    %1325 = vmatpush1.bf16.msra.mxu0 %v1130
    %1326 = vmatprep.subr.bf16.mxu0 %v1139
    %1327 = vmatpush1.bf16.msra.mxu0 %v1138
    %1328 = vmatprep.subr.bf16.mxu0 %v1147
    %1329 = vmatpush1.bf16.msra.mxu0 %v1146
    %1330 = vmatprep.subr.bf16.mxu0 %v1155
    %1331 = vmatpush1.bf16.msra.mxu0 %v1154
    %1332 = vmatprep.subr.bf16.mxu0 %v1163
    %1333 = vmatpush1.bf16.msra.mxu0 %v1162
    %1334 = vmatprep.subr.bf16.mxu0 %v1171
    %1335 = vmatpush1.bf16.msra.mxu0 %v1170
    %1336 = vmatprep.subr.bf16.mxu0 0
    %1337 = vmatpush1.bf16.msra.mxu0 0
    %1338 = vmatprep.subr.bf16.mxu0 0
    %1339 = vmatpush1.bf16.msra.mxu0 0
    %1340 = vmatprep.subr.bf16.mxu0 0
    %1341 = vmatpush1.bf16.msra.mxu0 0
    %1342 = vmatprep.subr.bf16.mxu0 0
    %1343 = vmatpush1.bf16.msra.mxu0 0
    %1344 = vmatprep.subr.bf16.mxu0 0
    %1345 = vmatpush1.bf16.msra.mxu0 0
    %1346 = vmatprep.subr.bf16.mxu0 0
    %1347 = vmatpush1.bf16.msra.mxu0 0
    %1348 = vmatprep.subr.bf16.mxu0 0
    %1349 = vmatpush1.bf16.msra.mxu0 0
    %1350 = vmatprep.subr.bf16.mxu0 0
    %1351 = vmatpush1.bf16.msra.mxu0 0
    %1352 = vmatprep.mubr.bf16.mxu0 0
    %1353 = vmatmul.mubr.bf16.gmra.mrb[0].mxu0 %v811
    %v1354 = vpop.f32.mrb[0].mxu0
    %v1355 = vadd.f32 %v897, %v1354
    %v1356 = vpop.f32.mrb[0].mxu0
    %v1357 = vadd.f32 %v901, %v1356
    %v1358 = vpop.f32.mrb[0].mxu0
    %v1359 = vpop.f32.mrb[0].mxu0
    %1360 = vdwg.mxu0
    %1361 = vmatprep.subr.bf16.mxu0 %v1117
    %1362 = vmatpush1.bf16.msra.mxu0 %v1116
    %1363 = vmatprep.subr.bf16.mxu0 %v1125
    %1364 = vmatpush1.bf16.msra.mxu0 %v1124
    %1365 = vmatprep.subr.bf16.mxu0 %v1133
    %1366 = vmatpush1.bf16.msra.mxu0 %v1132
    %1367 = vmatprep.subr.bf16.mxu0 %v1141
    %1368 = vmatpush1.bf16.msra.mxu0 %v1140
    %1369 = vmatprep.subr.bf16.mxu0 %v1149
    %1370 = vmatpush1.bf16.msra.mxu0 %v1148
    %1371 = vmatprep.subr.bf16.mxu0 %v1157
    %1372 = vmatpush1.bf16.msra.mxu0 %v1156
    %1373 = vmatprep.subr.bf16.mxu0 %v1165
    %1374 = vmatpush1.bf16.msra.mxu0 %v1164
    %1375 = vmatprep.subr.bf16.mxu0 %v1173
    %1376 = vmatpush1.bf16.msra.mxu0 %v1172
    %1377 = vmatprep.subr.bf16.mxu0 0
    %1378 = vmatpush1.bf16.msra.mxu0 0
    %1379 = vmatprep.subr.bf16.mxu0 0
    %1380 = vmatpush1.bf16.msra.mxu0 0
    %1381 = vmatprep.subr.bf16.mxu0 0
    %1382 = vmatpush1.bf16.msra.mxu0 0
    %1383 = vmatprep.subr.bf16.mxu0 0
    %1384 = vmatpush1.bf16.msra.mxu0 0
    %1385 = vmatprep.subr.bf16.mxu0 0
    %1386 = vmatpush1.bf16.msra.mxu0 0
    %1387 = vmatprep.subr.bf16.mxu0 0
    %1388 = vmatpush1.bf16.msra.mxu0 0
    %1389 = vmatprep.subr.bf16.mxu0 0
    %1390 = vmatpush1.bf16.msra.mxu0 0
    %1391 = vmatprep.subr.bf16.mxu0 0
    %1392 = vmatpush1.bf16.msra.mxu0 0
    %1393 = vmatprep.mubr.bf16.mxu0 0
    %1394 = vmatmul.mubr.bf16.gmra.mrb[0].mxu0 %v811
    %v1395 = vpop.f32.mrb[0].mxu0
    %v1396 = vadd.f32 %v905, %v1395
    %v1397 = vpop.f32.mrb[0].mxu0
    %v1398 = vadd.f32 %v909, %v1397
    %v1399 = vpop.f32.mrb[0].mxu0
    %v1400 = vpop.f32.mrb[0].mxu0
    %1401 = vdwg.mxu0
    %v1402 = vmax.f32 %v1273, 0.0
    %v1403 = vmax.f32 %v1275, 0.0
    %v1404 = vmax.f32 %v1314, 0.0
    %v1405 = vmax.f32 %v1316, 0.0
    %v1406 = vmax.f32 %v1355, 0.0
    %v1407 = vmax.f32 %v1357, 0.0
    %v1408 = vmax.f32 %v1396, 0.0
    %v1409 = vmax.f32 %v1398, 0.0
    %v1410 = vpack.c.bf16 %v1402, %v1402
    %v1411 = vpack.c.bf16 %v1403, %v1403
    %v1412 = vpack.c.bf16 %v1404, %v1404
    %v1413 = vpack.c.bf16 %v1405, %v1405
    %v1414 = vpack.c.bf16 %v1406, %v1406
    %v1415 = vpack.c.bf16 %v1407, %v1407
    %v1416 = vpack.c.bf16 %v1408, %v1408
    %v1417 = vpack.c.bf16 %v1409, %v1409
    %v1418 = vld [vmem:[#allocation9] sm:$0xf]
    %v1419 = vld [vmem:[#allocation9 + $0x4] sm:$0xf]
    %v1420 = vld [vmem:[#allocation9 + $0x8] sm:$0xf]
    %v1421 = vld [vmem:[#allocation9 + $0xc] sm:$0xf]
    %v1422 = vld [vmem:[#allocation9 + $0x10] sm:$0xf]
    %v1423 = vld [vmem:[#allocation9 + $0x14] sm:$0xf]
    %v1424 = vld [vmem:[#allocation9 + $0x18] sm:$0xf]
    %v1425 = vld [vmem:[#allocation9 + $0x1c] sm:$0xf]
    %v1426 = vld [vmem:[#allocation9 + $0x20] sm:$0xf]
    %v1427 = vld [vmem:[#allocation9 + $0x24] sm:$0xf]
    %v1428 = vld [vmem:[#allocation9 + $0x28] sm:$0xf]
    %v1429 = vld [vmem:[#allocation9 + $0x2c] sm:$0xf]
    %v1430 = vld [vmem:[#allocation9 + $0x30] sm:$0xf]
    %v1431 = vld [vmem:[#allocation9 + $0x34] sm:$0xf]
    %v1432 = vld [vmem:[#allocation9 + $0x38] sm:$0xf]
    %v1433 = vld [vmem:[#allocation9 + $0x3c] sm:$0xf]
    %v1434 = vld [vmem:[#allocation9 + $0x40] sm:$0xf]
    %v1435 = vld [vmem:[#allocation9 + $0x44] sm:$0xf]
    %v1436 = vld [vmem:[#allocation9 + $0x48] sm:$0xf]
    %v1437 = vld [vmem:[#allocation9 + $0x4c] sm:$0xf]
    %v1438 = vld [vmem:[#allocation9 + $0x50] sm:$0xf]
    %v1439 = vld [vmem:[#allocation9 + $0x54] sm:$0xf]
    %v1440 = vld [vmem:[#allocation9 + $0x58] sm:$0xf]
    %v1441 = vld [vmem:[#allocation9 + $0x5c] sm:$0xf]
    %v1442 = vld [vmem:[#allocation9 + $0x60] sm:$0xf]
    %v1443 = vld [vmem:[#allocation9 + $0x64] sm:$0xf]
    %v1444 = vld [vmem:[#allocation9 + $0x68] sm:$0xf]
    %v1445 = vld [vmem:[#allocation9 + $0x6c] sm:$0xf]
    %v1446 = vld [vmem:[#allocation9 + $0x70] sm:$0xf]
    %v1447 = vld [vmem:[#allocation9 + $0x74] sm:$0xf]
    %v1448 = vld [vmem:[#allocation9 + $0x78] sm:$0xf]
    %v1449 = vld [vmem:[#allocation9 + $0x7c] sm:$0xf]
    %v1450 = vld [vmem:[#allocation9 + $0x80] sm:$0xf]
    %v1451 = vld [vmem:[#allocation9 + $0x84] sm:$0xf]
    %v1452 = vld [vmem:[#allocation9 + $0x88] sm:$0xf]
    %v1453 = vld [vmem:[#allocation9 + $0x8c] sm:$0xf]
    %v1454 = vld [vmem:[#allocation9 + $0x90] sm:$0xf]
    %v1455 = vld [vmem:[#allocation9 + $0x94] sm:$0xf]
    %v1456 = vld [vmem:[#allocation9 + $0x98] sm:$0xf]
    %v1457 = vld [vmem:[#allocation9 + $0x9c] sm:$0xf]
    %v1458 = vld [vmem:[#allocation9 + $0xa0] sm:$0xf]
    %v1459 = vld [vmem:[#allocation9 + $0xa4] sm:$0xf]
    %v1460 = vld [vmem:[#allocation9 + $0xa8] sm:$0xf]
    %v1461 = vld [vmem:[#allocation9 + $0xac] sm:$0xf]
    %v1462 = vld [vmem:[#allocation9 + $0xb0] sm:$0xf]
    %v1463 = vld [vmem:[#allocation9 + $0xb4] sm:$0xf]
    %v1464 = vld [vmem:[#allocation9 + $0xb8] sm:$0xf]
    %v1465 = vld [vmem:[#allocation9 + $0xbc] sm:$0xf]
    %v1466 = vld [vmem:[#allocation9 + $0xc0] sm:$0xf]
    %v1467 = vld [vmem:[#allocation9 + $0xc4] sm:$0xf]
    %v1468 = vld [vmem:[#allocation9 + $0xc8] sm:$0xf]
    %v1469 = vld [vmem:[#allocation9 + $0xcc] sm:$0xf]
    %v1470 = vld [vmem:[#allocation9 + $0xd0] sm:$0xf]
    %v1471 = vld [vmem:[#allocation9 + $0xd4] sm:$0xf]
    %v1472 = vld [vmem:[#allocation9 + $0xd8] sm:$0xf]
    %v1473 = vld [vmem:[#allocation9 + $0xdc] sm:$0xf]
    %v1474 = vld [vmem:[#allocation9 + $0xe0] sm:$0xf]
    %v1475 = vld [vmem:[#allocation9 + $0xe4] sm:$0xf]
    %v1476 = vld [vmem:[#allocation9 + $0xe8] sm:$0xf]
    %v1477 = vld [vmem:[#allocation9 + $0xec] sm:$0xf]
    %v1478 = vld [vmem:[#allocation9 + $0xf0] sm:$0xf]
    %v1479 = vld [vmem:[#allocation9 + $0xf4] sm:$0xf]
    %v1480 = vld [vmem:[#allocation9 + $0xf8] sm:$0xf]
    %v1481 = vld [vmem:[#allocation9 + $0xfc] sm:$0xf]
    %v1482 = vld [vmem:[#allocation9 + $0x100] sm:$0xf]
    %v1483 = vld [vmem:[#allocation9 + $0x104] sm:$0xf]
    %v1484 = vld [vmem:[#allocation9 + $0x108] sm:$0xf]
    %v1485 = vld [vmem:[#allocation9 + $0x10c] sm:$0xf]
    %v1486 = vld [vmem:[#allocation9 + $0x110] sm:$0xf]
    %v1487 = vld [vmem:[#allocation9 + $0x114] sm:$0xf]
    %v1488 = vld [vmem:[#allocation9 + $0x118] sm:$0xf]
    %v1489 = vld [vmem:[#allocation9 + $0x11c] sm:$0xf]
    %v1490 = vld [vmem:[#allocation9 + $0x120] sm:$0xf]
    %v1491 = vld [vmem:[#allocation9 + $0x124] sm:$0xf]
    %v1492 = vld [vmem:[#allocation9 + $0x128] sm:$0xf]
    %v1493 = vld [vmem:[#allocation9 + $0x12c] sm:$0xf]
    %v1494 = vld [vmem:[#allocation9 + $0x130] sm:$0xf]
    %v1495 = vld [vmem:[#allocation9 + $0x134] sm:$0xf]
    %v1496 = vld [vmem:[#allocation9 + $0x138] sm:$0xf]
    %v1497 = vld [vmem:[#allocation9 + $0x13c] sm:$0xf]
    %v1498 = vld [vmem:[#allocation9 + $0x140] sm:$0xf]
    %v1499 = vld [vmem:[#allocation9 + $0x144] sm:$0xf]
    %v1500 = vld [vmem:[#allocation9 + $0x148] sm:$0xf]
    %v1501 = vld [vmem:[#allocation9 + $0x14c] sm:$0xf]
    %v1502 = vld [vmem:[#allocation9 + $0x150] sm:$0xf]
    %v1503 = vld [vmem:[#allocation9 + $0x154] sm:$0xf]
    %v1504 = vld [vmem:[#allocation9 + $0x158] sm:$0xf]
    %v1505 = vld [vmem:[#allocation9 + $0x15c] sm:$0xf]
    %v1506 = vld [vmem:[#allocation9 + $0x160] sm:$0xf]
    %v1507 = vld [vmem:[#allocation9 + $0x164] sm:$0xf]
    %v1508 = vld [vmem:[#allocation9 + $0x168] sm:$0xf]
    %v1509 = vld [vmem:[#allocation9 + $0x16c] sm:$0xf]
    %v1510 = vld [vmem:[#allocation9 + $0x170] sm:$0xf]
    %v1511 = vld [vmem:[#allocation9 + $0x174] sm:$0xf]
    %v1512 = vld [vmem:[#allocation9 + $0x178] sm:$0xf]
    %v1513 = vld [vmem:[#allocation9 + $0x17c] sm:$0xf]
    %v1514 = vld [vmem:[#allocation9 + $0x180] sm:$0xf]
    %v1515 = vld [vmem:[#allocation9 + $0x184] sm:$0xf]
    %v1516 = vld [vmem:[#allocation9 + $0x188] sm:$0xf]
    %v1517 = vld [vmem:[#allocation9 + $0x18c] sm:$0xf]
    %v1518 = vld [vmem:[#allocation9 + $0x190] sm:$0xf]
    %v1519 = vld [vmem:[#allocation9 + $0x194] sm:$0xf]
    %v1520 = vld [vmem:[#allocation9 + $0x198] sm:$0xf]
    %v1521 = vld [vmem:[#allocation9 + $0x19c] sm:$0xf]
    %v1522 = vld [vmem:[#allocation9 + $0x1a0] sm:$0xf]
    %v1523 = vld [vmem:[#allocation9 + $0x1a4] sm:$0xf]
    %v1524 = vld [vmem:[#allocation9 + $0x1a8] sm:$0xf]
    %v1525 = vld [vmem:[#allocation9 + $0x1ac] sm:$0xf]
    %v1526 = vld [vmem:[#allocation9 + $0x1b0] sm:$0xf]
    %v1527 = vld [vmem:[#allocation9 + $0x1b4] sm:$0xf]
    %v1528 = vld [vmem:[#allocation9 + $0x1b8] sm:$0xf]
    %v1529 = vld [vmem:[#allocation9 + $0x1bc] sm:$0xf]
    %v1530 = vld [vmem:[#allocation9 + $0x1c0] sm:$0xf]
    %v1531 = vld [vmem:[#allocation9 + $0x1c4] sm:$0xf]
    %v1532 = vld [vmem:[#allocation9 + $0x1c8] sm:$0xf]
    %v1533 = vld [vmem:[#allocation9 + $0x1cc] sm:$0xf]
    %v1534 = vld [vmem:[#allocation9 + $0x1d0] sm:$0xf]
    %v1535 = vld [vmem:[#allocation9 + $0x1d4] sm:$0xf]
    %v1536 = vld [vmem:[#allocation9 + $0x1d8] sm:$0xf]
    %v1537 = vld [vmem:[#allocation9 + $0x1dc] sm:$0xf]
    %v1538 = vld [vmem:[#allocation9 + $0x1e0] sm:$0xf]
    %v1539 = vld [vmem:[#allocation9 + $0x1e4] sm:$0xf]
    %v1540 = vld [vmem:[#allocation9 + $0x1e8] sm:$0xf]
    %v1541 = vld [vmem:[#allocation9 + $0x1ec] sm:$0xf]
    %v1542 = vld [vmem:[#allocation9 + $0x1f0] sm:$0xf]
    %v1543 = vld [vmem:[#allocation9 + $0x1f4] sm:$0xf]
    %v1544 = vld [vmem:[#allocation9 + $0x1f8] sm:$0xf]
    %v1545 = vld [vmem:[#allocation9 + $0x1fc] sm:$0xf]
    %v1546 = vld [vmem:[%s16] sm:$0x1]
    %v1548 = vlaneseq
    %v1549 = vshrl.u32 %v1548, 7
    %v1550 = vsub.s32 0, %v1549
    %v1551 = vrot.slane %v1546, %v1550
    %v1681 = vunpack.c.l.b16 %v1418
    %v1682 = vunpack.c.l.b16 %v1419
    %v1683 = vunpack.c.l.b16 %v1420
    %v1684 = vunpack.c.l.b16 %v1421
    %v1685 = vunpack.c.l.b16 %v1422
    %v1686 = vunpack.c.l.b16 %v1423
    %v1687 = vunpack.c.l.b16 %v1424
    %v1688 = vunpack.c.l.b16 %v1425
    %v1689 = vunpack.c.l.b16 %v1426
    %v1690 = vunpack.c.l.b16 %v1427
    %v1691 = vunpack.c.l.b16 %v1428
    %v1692 = vunpack.c.l.b16 %v1429
    %v1693 = vunpack.c.l.b16 %v1430
    %v1694 = vunpack.c.l.b16 %v1431
    %v1695 = vunpack.c.l.b16 %v1432
    %v1696 = vunpack.c.l.b16 %v1433
    %v1697 = vunpack.c.l.b16 %v1434
    %v1698 = vunpack.c.l.b16 %v1435
    %v1699 = vunpack.c.l.b16 %v1436
    %v1700 = vunpack.c.l.b16 %v1437
    %v1701 = vunpack.c.l.b16 %v1438
    %v1702 = vunpack.c.l.b16 %v1439
    %v1703 = vunpack.c.l.b16 %v1440
    %v1704 = vunpack.c.l.b16 %v1441
    %v1705 = vunpack.c.l.b16 %v1442
    %v1706 = vunpack.c.l.b16 %v1443
    %v1707 = vunpack.c.l.b16 %v1444
    %v1708 = vunpack.c.l.b16 %v1445
    %v1709 = vunpack.c.l.b16 %v1446
    %v1710 = vunpack.c.l.b16 %v1447
    %v1711 = vunpack.c.l.b16 %v1448
    %v1712 = vunpack.c.l.b16 %v1449
    %v1713 = vunpack.c.l.b16 %v1450
    %v1714 = vunpack.c.l.b16 %v1451
    %v1715 = vunpack.c.l.b16 %v1452
    %v1716 = vunpack.c.l.b16 %v1453
    %v1717 = vunpack.c.l.b16 %v1454
    %v1718 = vunpack.c.l.b16 %v1455
    %v1719 = vunpack.c.l.b16 %v1456
    %v1720 = vunpack.c.l.b16 %v1457
    %v1721 = vunpack.c.l.b16 %v1458
    %v1722 = vunpack.c.l.b16 %v1459
    %v1723 = vunpack.c.l.b16 %v1460
    %v1724 = vunpack.c.l.b16 %v1461
    %v1725 = vunpack.c.l.b16 %v1462
    %v1726 = vunpack.c.l.b16 %v1463
    %v1727 = vunpack.c.l.b16 %v1464
    %v1728 = vunpack.c.l.b16 %v1465
    %v1729 = vunpack.c.l.b16 %v1466
    %v1730 = vunpack.c.l.b16 %v1467
    %v1731 = vunpack.c.l.b16 %v1468
    %v1732 = vunpack.c.l.b16 %v1469
    %v1733 = vunpack.c.l.b16 %v1470
    %v1734 = vunpack.c.l.b16 %v1471
    %v1735 = vunpack.c.l.b16 %v1472
    %v1736 = vunpack.c.l.b16 %v1473
    %v1737 = vunpack.c.l.b16 %v1474
    %v1738 = vunpack.c.l.b16 %v1475
    %v1739 = vunpack.c.l.b16 %v1476
    %v1740 = vunpack.c.l.b16 %v1477
    %v1741 = vunpack.c.l.b16 %v1478
    %v1742 = vunpack.c.l.b16 %v1479
    %v1743 = vunpack.c.l.b16 %v1480
    %v1744 = vunpack.c.l.b16 %v1481
    %v1745 = vunpack.c.l.b16 %v1482
    %v1746 = vunpack.c.l.b16 %v1483
    %v1747 = vunpack.c.l.b16 %v1484
    %v1748 = vunpack.c.l.b16 %v1485
    %v1749 = vunpack.c.l.b16 %v1486
    %v1750 = vunpack.c.l.b16 %v1487
    %v1751 = vunpack.c.l.b16 %v1488
    %v1752 = vunpack.c.l.b16 %v1489
    %v1753 = vunpack.c.l.b16 %v1490
    %v1754 = vunpack.c.l.b16 %v1491
    %v1755 = vunpack.c.l.b16 %v1492
    %v1756 = vunpack.c.l.b16 %v1493
    %v1757 = vunpack.c.l.b16 %v1494
    %v1758 = vunpack.c.l.b16 %v1495
    %v1759 = vunpack.c.l.b16 %v1496
    %v1760 = vunpack.c.l.b16 %v1497
    %v1761 = vunpack.c.l.b16 %v1498
    %v1762 = vunpack.c.l.b16 %v1499
    %v1763 = vunpack.c.l.b16 %v1500
    %v1764 = vunpack.c.l.b16 %v1501
    %v1765 = vunpack.c.l.b16 %v1502
    %v1766 = vunpack.c.l.b16 %v1503
    %v1767 = vunpack.c.l.b16 %v1504
    %v1768 = vunpack.c.l.b16 %v1505
    %v1769 = vunpack.c.l.b16 %v1506
    %v1770 = vunpack.c.l.b16 %v1507
    %v1771 = vunpack.c.l.b16 %v1508
    %v1772 = vunpack.c.l.b16 %v1509
    %v1773 = vunpack.c.l.b16 %v1510
    %v1774 = vunpack.c.l.b16 %v1511
    %v1775 = vunpack.c.l.b16 %v1512
    %v1776 = vunpack.c.l.b16 %v1513
    %v1777 = vunpack.c.l.b16 %v1514
    %v1778 = vunpack.c.l.b16 %v1515
    %v1779 = vunpack.c.l.b16 %v1516
    %v1780 = vunpack.c.l.b16 %v1517
    %v1781 = vunpack.c.l.b16 %v1518
    %v1782 = vunpack.c.l.b16 %v1519
    %v1783 = vunpack.c.l.b16 %v1520
    %v1784 = vunpack.c.l.b16 %v1521
    %v1785 = vunpack.c.l.b16 %v1522
    %v1786 = vunpack.c.l.b16 %v1523
    %v1787 = vunpack.c.l.b16 %v1524
    %v1788 = vunpack.c.l.b16 %v1525
    %v1789 = vunpack.c.l.b16 %v1526
    %v1790 = vunpack.c.l.b16 %v1527
    %v1791 = vunpack.c.l.b16 %v1528
    %v1792 = vunpack.c.l.b16 %v1529
    %v1793 = vunpack.c.l.b16 %v1530
    %v1794 = vunpack.c.l.b16 %v1531
    %v1795 = vunpack.c.l.b16 %v1532
    %v1796 = vunpack.c.l.b16 %v1533
    %v1797 = vunpack.c.l.b16 %v1534
    %v1798 = vunpack.c.l.b16 %v1535
    %v1799 = vunpack.c.l.b16 %v1536
    %v1800 = vunpack.c.l.b16 %v1537
    %v1801 = vunpack.c.l.b16 %v1538
    %v1802 = vunpack.c.l.b16 %v1539
    %v1803 = vunpack.c.l.b16 %v1540
    %v1804 = vunpack.c.l.b16 %v1541
    %v1805 = vunpack.c.l.b16 %v1542
    %v1806 = vunpack.c.l.b16 %v1543
    %v1807 = vunpack.c.l.b16 %v1544
    %v1808 = vunpack.c.l.b16 %v1545
    %v1809 = vpack.c.b16 %v1682, %v1681
    %v1810 = vpack.c.b16 %v1684, %v1683
    %v1811 = vpack.c.b16 %v1686, %v1685
    %v1812 = vpack.c.b16 %v1688, %v1687
    %v1813 = vpack.c.b16 %v1690, %v1689
    %v1814 = vpack.c.b16 %v1692, %v1691
    %v1815 = vpack.c.b16 %v1694, %v1693
    %v1816 = vpack.c.b16 %v1696, %v1695
    %v1817 = vpack.c.b16 %v1698, %v1697
    %v1818 = vpack.c.b16 %v1700, %v1699
    %v1819 = vpack.c.b16 %v1702, %v1701
    %v1820 = vpack.c.b16 %v1704, %v1703
    %v1821 = vpack.c.b16 %v1706, %v1705
    %v1822 = vpack.c.b16 %v1708, %v1707
    %v1823 = vpack.c.b16 %v1710, %v1709
    %v1824 = vpack.c.b16 %v1712, %v1711
    %v1825 = vpack.c.b16 %v1714, %v1713
    %v1826 = vpack.c.b16 %v1716, %v1715
    %v1827 = vpack.c.b16 %v1718, %v1717
    %v1828 = vpack.c.b16 %v1720, %v1719
    %v1829 = vpack.c.b16 %v1722, %v1721
    %v1830 = vpack.c.b16 %v1724, %v1723
    %v1831 = vpack.c.b16 %v1726, %v1725
    %v1832 = vpack.c.b16 %v1728, %v1727
    %v1833 = vpack.c.b16 %v1730, %v1729
    %v1834 = vpack.c.b16 %v1732, %v1731
    %v1835 = vpack.c.b16 %v1734, %v1733
    %v1836 = vpack.c.b16 %v1736, %v1735
    %v1837 = vpack.c.b16 %v1738, %v1737
    %v1838 = vpack.c.b16 %v1740, %v1739
    %v1839 = vpack.c.b16 %v1742, %v1741
    %v1840 = vpack.c.b16 %v1744, %v1743
    %v1841 = vpack.c.b16 %v1746, %v1745
    %v1842 = vpack.c.b16 %v1748, %v1747
    %v1843 = vpack.c.b16 %v1750, %v1749
    %v1844 = vpack.c.b16 %v1752, %v1751
    %v1845 = vpack.c.b16 %v1754, %v1753
    %v1846 = vpack.c.b16 %v1756, %v1755
    %v1847 = vpack.c.b16 %v1758, %v1757
    %v1848 = vpack.c.b16 %v1760, %v1759
    %v1849 = vpack.c.b16 %v1762, %v1761
    %v1850 = vpack.c.b16 %v1764, %v1763
    %v1851 = vpack.c.b16 %v1766, %v1765
    %v1852 = vpack.c.b16 %v1768, %v1767
    %v1853 = vpack.c.b16 %v1770, %v1769
    %v1854 = vpack.c.b16 %v1772, %v1771
    %v1855 = vpack.c.b16 %v1774, %v1773
    %v1856 = vpack.c.b16 %v1776, %v1775
    %v1857 = vpack.c.b16 %v1778, %v1777
    %v1858 = vpack.c.b16 %v1780, %v1779
    %v1859 = vpack.c.b16 %v1782, %v1781
    %v1860 = vpack.c.b16 %v1784, %v1783
    %v1861 = vpack.c.b16 %v1786, %v1785
    %v1862 = vpack.c.b16 %v1788, %v1787
    %v1863 = vpack.c.b16 %v1790, %v1789
    %v1864 = vpack.c.b16 %v1792, %v1791
    %v1865 = vpack.c.b16 %v1794, %v1793
    %v1866 = vpack.c.b16 %v1796, %v1795
    %v1867 = vpack.c.b16 %v1798, %v1797
    %v1868 = vpack.c.b16 %v1800, %v1799
    %v1869 = vpack.c.b16 %v1802, %v1801
    %v1870 = vpack.c.b16 %v1804, %v1803
    %v1871 = vpack.c.b16 %v1806, %v1805
    %v1872 = vpack.c.b16 %v1808, %v1807
    %1937 = vmatprep.subr.bf16.mxu0 0
    %1938 = vmatpush1.bf16.msra.mxu0 %v1809
    %1939 = vmatprep.subr.bf16.mxu0 0
    %1940 = vmatpush1.bf16.msra.mxu0 %v1810
    %1941 = vmatprep.subr.bf16.mxu0 0
    %1942 = vmatpush1.bf16.msra.mxu0 %v1811
    %1943 = vmatprep.subr.bf16.mxu0 0
    %1944 = vmatpush1.bf16.msra.mxu0 %v1812
    %1945 = vmatprep.subr.bf16.mxu0 0
    %1946 = vmatpush1.bf16.msra.mxu0 %v1813
    %1947 = vmatprep.subr.bf16.mxu0 0
    %1948 = vmatpush1.bf16.msra.mxu0 %v1814
    %1949 = vmatprep.subr.bf16.mxu0 0
    %1950 = vmatpush1.bf16.msra.mxu0 %v1815
    %1951 = vmatprep.subr.bf16.mxu0 0
    %1952 = vmatpush1.bf16.msra.mxu0 %v1816
    %1953 = vmatprep.subr.bf16.mxu0 0
    %1954 = vmatpush1.bf16.msra.mxu0 %v1817
    %1955 = vmatprep.subr.bf16.mxu0 0
    %1956 = vmatpush1.bf16.msra.mxu0 %v1818
    %1957 = vmatprep.subr.bf16.mxu0 0
    %1958 = vmatpush1.bf16.msra.mxu0 %v1819
    %1959 = vmatprep.subr.bf16.mxu0 0
    %1960 = vmatpush1.bf16.msra.mxu0 %v1820
    %1961 = vmatprep.subr.bf16.mxu0 0
    %1962 = vmatpush1.bf16.msra.mxu0 %v1821
    %1963 = vmatprep.subr.bf16.mxu0 0
    %1964 = vmatpush1.bf16.msra.mxu0 %v1822
    %1965 = vmatprep.subr.bf16.mxu0 0
    %1966 = vmatpush1.bf16.msra.mxu0 %v1823
    %1967 = vmatprep.subr.bf16.mxu0 0
    %1968 = vmatpush1.bf16.msra.mxu0 %v1824
    %1969 = vmatprep.mubr.bf16.mxu0 %v1411
    %1970 = vmatmul.mubr.bf16.gmra.mrb[0].mxu0 %v1410
    %v1971 = vpop.f32.mrb[0].mxu0
    %v1972 = vadd.f32 %v1551, %v1971
    %v1973 = vpop.f32.mrb[0].mxu0
    %v1974 = vpop.f32.mrb[0].mxu0
    %v1975 = vpop.f32.mrb[0].mxu0
    %1976 = vdwg.mxu0
    %1977 = vmatprep.subr.bf16.mxu0 0
    %1978 = vmatpush1.bf16.msra.mxu0 %v1825
    %1979 = vmatprep.subr.bf16.mxu0 0
    %1980 = vmatpush1.bf16.msra.mxu0 %v1826
    %1981 = vmatprep.subr.bf16.mxu0 0
    %1982 = vmatpush1.bf16.msra.mxu0 %v1827
    %1983 = vmatprep.subr.bf16.mxu0 0
    %1984 = vmatpush1.bf16.msra.mxu0 %v1828
    %1985 = vmatprep.subr.bf16.mxu0 0
    %1986 = vmatpush1.bf16.msra.mxu0 %v1829
    %1987 = vmatprep.subr.bf16.mxu0 0
    %1988 = vmatpush1.bf16.msra.mxu0 %v1830
    %1989 = vmatprep.subr.bf16.mxu0 0
    %1990 = vmatpush1.bf16.msra.mxu0 %v1831
    %1991 = vmatprep.subr.bf16.mxu0 0
    %1992 = vmatpush1.bf16.msra.mxu0 %v1832
    %1993 = vmatprep.subr.bf16.mxu0 0
    %1994 = vmatpush1.bf16.msra.mxu0 %v1833
    %1995 = vmatprep.subr.bf16.mxu0 0
    %1996 = vmatpush1.bf16.msra.mxu0 %v1834
    %1997 = vmatprep.subr.bf16.mxu0 0
    %1998 = vmatpush1.bf16.msra.mxu0 %v1835
    %1999 = vmatprep.subr.bf16.mxu0 0
    %2000 = vmatpush1.bf16.msra.mxu0 %v1836
    %2001 = vmatprep.subr.bf16.mxu0 0
    %2002 = vmatpush1.bf16.msra.mxu0 %v1837
    %2003 = vmatprep.subr.bf16.mxu0 0
    %2004 = vmatpush1.bf16.msra.mxu0 %v1838
    %2005 = vmatprep.subr.bf16.mxu0 0
    %2006 = vmatpush1.bf16.msra.mxu0 %v1839
    %2007 = vmatprep.subr.bf16.mxu0 0
    %2008 = vmatpush1.bf16.msra.mxu0 %v1840
    %2009 = vmatprep.mubr.bf16.mxu0 %v1413
    %2010 = vmatmul.mubr.bf16.gmra.mrb[0].mxu0 %v1412
    %v2011 = vpop.f32.mrb[0].mxu0
    %v2012 = vadd.f32 %v1972, %v2011
    %v2013 = vpop.f32.mrb[0].mxu0
    %v2014 = vpop.f32.mrb[0].mxu0
    %v2015 = vpop.f32.mrb[0].mxu0
    %2016 = vdwg.mxu0
    %2017 = vmatprep.subr.bf16.mxu0 0
    %2018 = vmatpush1.bf16.msra.mxu0 %v1841
    %2019 = vmatprep.subr.bf16.mxu0 0
    %2020 = vmatpush1.bf16.msra.mxu0 %v1842
    %2021 = vmatprep.subr.bf16.mxu0 0
    %2022 = vmatpush1.bf16.msra.mxu0 %v1843
    %2023 = vmatprep.subr.bf16.mxu0 0
    %2024 = vmatpush1.bf16.msra.mxu0 %v1844
    %2025 = vmatprep.subr.bf16.mxu0 0
    %2026 = vmatpush1.bf16.msra.mxu0 %v1845
    %2027 = vmatprep.subr.bf16.mxu0 0
    %2028 = vmatpush1.bf16.msra.mxu0 %v1846
    %2029 = vmatprep.subr.bf16.mxu0 0
    %2030 = vmatpush1.bf16.msra.mxu0 %v1847
    %2031 = vmatprep.subr.bf16.mxu0 0
    %2032 = vmatpush1.bf16.msra.mxu0 %v1848
    %2033 = vmatprep.subr.bf16.mxu0 0
    %2034 = vmatpush1.bf16.msra.mxu0 %v1849
    %2035 = vmatprep.subr.bf16.mxu0 0
    %2036 = vmatpush1.bf16.msra.mxu0 %v1850
    %2037 = vmatprep.subr.bf16.mxu0 0
    %2038 = vmatpush1.bf16.msra.mxu0 %v1851
    %2039 = vmatprep.subr.bf16.mxu0 0
    %2040 = vmatpush1.bf16.msra.mxu0 %v1852
    %2041 = vmatprep.subr.bf16.mxu0 0
    %2042 = vmatpush1.bf16.msra.mxu0 %v1853
    %2043 = vmatprep.subr.bf16.mxu0 0
    %2044 = vmatpush1.bf16.msra.mxu0 %v1854
    %2045 = vmatprep.subr.bf16.mxu0 0
    %2046 = vmatpush1.bf16.msra.mxu0 %v1855
    %2047 = vmatprep.subr.bf16.mxu0 0
    %2048 = vmatpush1.bf16.msra.mxu0 %v1856
    %2049 = vmatprep.mubr.bf16.mxu0 %v1415
    %2050 = vmatmul.mubr.bf16.gmra.mrb[0].mxu0 %v1414
    %v2051 = vpop.f32.mrb[0].mxu0
    %v2052 = vadd.f32 %v2012, %v2051
    %v2053 = vpop.f32.mrb[0].mxu0
    %v2054 = vpop.f32.mrb[0].mxu0
    %v2055 = vpop.f32.mrb[0].mxu0
    %2056 = vdwg.mxu0
    %2057 = vmatprep.subr.bf16.mxu0 0
    %2058 = vmatpush1.bf16.msra.mxu0 %v1857
    %2059 = vmatprep.subr.bf16.mxu0 0
    %2060 = vmatpush1.bf16.msra.mxu0 %v1858
    %2061 = vmatprep.subr.bf16.mxu0 0
    %2062 = vmatpush1.bf16.msra.mxu0 %v1859
    %2063 = vmatprep.subr.bf16.mxu0 0
    %2064 = vmatpush1.bf16.msra.mxu0 %v1860
    %2065 = vmatprep.subr.bf16.mxu0 0
    %2066 = vmatpush1.bf16.msra.mxu0 %v1861
    %2067 = vmatprep.subr.bf16.mxu0 0
    %2068 = vmatpush1.bf16.msra.mxu0 %v1862
    %2069 = vmatprep.subr.bf16.mxu0 0
    %2070 = vmatpush1.bf16.msra.mxu0 %v1863
    %2071 = vmatprep.subr.bf16.mxu0 0
    %2072 = vmatpush1.bf16.msra.mxu0 %v1864
    %2073 = vmatprep.subr.bf16.mxu0 0
    %2074 = vmatpush1.bf16.msra.mxu0 %v1865
    %2075 = vmatprep.subr.bf16.mxu0 0
    %2076 = vmatpush1.bf16.msra.mxu0 %v1866
    %2077 = vmatprep.subr.bf16.mxu0 0
    %2078 = vmatpush1.bf16.msra.mxu0 %v1867
    %2079 = vmatprep.subr.bf16.mxu0 0
    %2080 = vmatpush1.bf16.msra.mxu0 %v1868
    %2081 = vmatprep.subr.bf16.mxu0 0
    %2082 = vmatpush1.bf16.msra.mxu0 %v1869
    %2083 = vmatprep.subr.bf16.mxu0 0
    %2084 = vmatpush1.bf16.msra.mxu0 %v1870
    %2085 = vmatprep.subr.bf16.mxu0 0
    %2086 = vmatpush1.bf16.msra.mxu0 %v1871
    %2087 = vmatprep.subr.bf16.mxu0 0
    %2088 = vmatpush1.bf16.msra.mxu0 %v1872
    %2089 = vmatprep.mubr.bf16.mxu0 %v1417
    %2090 = vmatmul.mubr.bf16.gmra.mrb[0].mxu0 %v1416
    %v2091 = vpop.f32.mrb[0].mxu0
    %v2092 = vadd.f32 %v2052, %v2091
    %v2093 = vpop.f32.mrb[0].mxu0
    %v2094 = vpop.f32.mrb[0].mxu0
    %v2095 = vpop.f32.mrb[0].mxu0
    %2096 = vdwg.mxu0
    %v2097 = vld [vmem:[%s1] sm:$0x1]
    %vm2098 = vcmp.eq.s32.totalorder %v2097, 0
    %vm2099 = vcmp.eq.s32.totalorder %v2097, 1
    %vm2100 = vcmp.eq.s32.totalorder %v2097, 2
    %vm2101 = vcmp.eq.s32.totalorder %v2097, 3
    %vm2102 = vcmp.eq.s32.totalorder %v2097, 4
    %vm2103 = vcmp.eq.s32.totalorder %v2097, 5
    %vm2104 = vcmp.eq.s32.totalorder %v2097, 6
    %vm2105 = vcmp.eq.s32.totalorder %v2097, 7
    %v2106 = vsel %vm2098, 1, 0
    %v2107 = vlaneseq
    %v2108 = vshrl.u32 %v2107, 7
    %v2109 = vsub.s32 0, %v2108
    %v2110 = vrot.slane %v2106, %v2109
    %vm2111 = vcmp.eq.s32.totalorder %v2110, 1
    %v2112 = vsel %vm2111, %v2092, -1e+30
    %2113 = vmax.xlane.f32.xlu0 %v2112
    %v2114 = vpop.xlane.xlu0 %2113
    %v2115 = vsel %vm2111, %v2114, 0.0
    %v2116 = vsel %vm2099, 1, 0
    %v2117 = vlaneseq
    %v2118 = vshrl.u32 %v2117, 7
    %v2119 = vsub.s32 0, %v2118
    %v2120 = vrot.slane %v2116, %v2119
    %vm2121 = vcmp.eq.s32.totalorder %v2120, 1
    %v2122 = vsel %vm2121, %v2092, -1e+30
    %2123 = vmax.xlane.f32.xlu0 %v2122
    %v2124 = vpop.xlane.xlu0 %2123
    %v2125 = vsel %vm2121, %v2124, %v2115
    %v2126 = vsel %vm2100, 1, 0
    %v2127 = vlaneseq
    %v2128 = vshrl.u32 %v2127, 7
    %v2129 = vsub.s32 0, %v2128
    %v2130 = vrot.slane %v2126, %v2129
    %vm2131 = vcmp.eq.s32.totalorder %v2130, 1
    %v2132 = vsel %vm2131, %v2092, -1e+30
    %2133 = vmax.xlane.f32.xlu0 %v2132
    %v2134 = vpop.xlane.xlu0 %2133
    %v2135 = vsel %vm2131, %v2134, %v2125
    %v2136 = vsel %vm2101, 1, 0
    %v2137 = vlaneseq
    %v2138 = vshrl.u32 %v2137, 7
    %v2139 = vsub.s32 0, %v2138
    %v2140 = vrot.slane %v2136, %v2139
    %vm2141 = vcmp.eq.s32.totalorder %v2140, 1
    %v2142 = vsel %vm2141, %v2092, -1e+30
    %2143 = vmax.xlane.f32.xlu0 %v2142
    %v2144 = vpop.xlane.xlu0 %2143
    %v2145 = vsel %vm2141, %v2144, %v2135
    %v2146 = vsel %vm2102, 1, 0
    %v2147 = vlaneseq
    %v2148 = vshrl.u32 %v2147, 7
    %v2149 = vsub.s32 0, %v2148
    %v2150 = vrot.slane %v2146, %v2149
    %vm2151 = vcmp.eq.s32.totalorder %v2150, 1
    %v2152 = vsel %vm2151, %v2092, -1e+30
    %2153 = vmax.xlane.f32.xlu0 %v2152
    %v2154 = vpop.xlane.xlu0 %2153
    %v2155 = vsel %vm2151, %v2154, %v2145
    %v2156 = vsel %vm2103, 1, 0
    %v2157 = vlaneseq
    %v2158 = vshrl.u32 %v2157, 7
    %v2159 = vsub.s32 0, %v2158
    %v2160 = vrot.slane %v2156, %v2159
    %vm2161 = vcmp.eq.s32.totalorder %v2160, 1
    %v2162 = vsel %vm2161, %v2092, -1e+30
    %2163 = vmax.xlane.f32.xlu0 %v2162
    %v2164 = vpop.xlane.xlu0 %2163
    %v2165 = vsel %vm2161, %v2164, %v2155
    %v2166 = vsel %vm2104, 1, 0
    %v2167 = vlaneseq
    %v2168 = vshrl.u32 %v2167, 7
    %v2169 = vsub.s32 0, %v2168
    %v2170 = vrot.slane %v2166, %v2169
    %vm2171 = vcmp.eq.s32.totalorder %v2170, 1
    %v2172 = vsel %vm2171, %v2092, -1e+30
    %2173 = vmax.xlane.f32.xlu0 %v2172
    %v2174 = vpop.xlane.xlu0 %2173
    %v2175 = vsel %vm2171, %v2174, %v2165
    %v2176 = vsel %vm2105, 1, 0
    %v2177 = vlaneseq
    %v2178 = vshrl.u32 %v2177, 7
    %v2179 = vsub.s32 0, %v2178
    %v2180 = vrot.slane %v2176, %v2179
    %vm2181 = vcmp.eq.s32.totalorder %v2180, 1
    %v2182 = vsel %vm2181, %v2092, -1e+30
    %2183 = vmax.xlane.f32.xlu0 %v2182
    %v2184 = vpop.xlane.xlu0 %2183
    %v2185 = vsel %vm2181, %v2184, %v2175
    %v2186 = vsub.f32 %v2092, %v2185
    %v2187 = vmul.f32 %v2186, 1.442695
    %v2188 = vpow.pop %v2187
    %v2189 = vsel %vm2111, %v2188, 0.0
    %2190 = vadd.xlane.f32.xlu0 %v2189
    %v2191 = vpop.xlane.xlu0 %2190
    %v2192 = vsel %vm2111, %v2191, 1.0
    %v2193 = vsel %vm2121, %v2188, 0.0
    %2194 = vadd.xlane.f32.xlu0 %v2193
    %v2195 = vpop.xlane.xlu0 %2194
    %v2196 = vsel %vm2121, %v2195, %v2192
    %v2197 = vsel %vm2131, %v2188, 0.0
    %2198 = vadd.xlane.f32.xlu0 %v2197
    %v2199 = vpop.xlane.xlu0 %2198
    %v2200 = vsel %vm2131, %v2199, %v2196
    %v2201 = vsel %vm2141, %v2188, 0.0
    %2202 = vadd.xlane.f32.xlu0 %v2201
    %v2203 = vpop.xlane.xlu0 %2202
    %v2204 = vsel %vm2141, %v2203, %v2200
    %v2205 = vsel %vm2151, %v2188, 0.0
    %2206 = vadd.xlane.f32.xlu0 %v2205
    %v2207 = vpop.xlane.xlu0 %2206
    %v2208 = vsel %vm2151, %v2207, %v2204
    %v2209 = vsel %vm2161, %v2188, 0.0
    %2210 = vadd.xlane.f32.xlu0 %v2209
    %v2211 = vpop.xlane.xlu0 %2210
    %v2212 = vsel %vm2161, %v2211, %v2208
    %v2213 = vsel %vm2171, %v2188, 0.0
    %2214 = vadd.xlane.f32.xlu0 %v2213
    %v2215 = vpop.xlane.xlu0 %2214
    %v2216 = vsel %vm2171, %v2215, %v2212
    %v2217 = vsel %vm2181, %v2188, 0.0
    %2218 = vadd.xlane.f32.xlu0 %v2217
    %v2219 = vpop.xlane.xlu0 %2218
    %v2220 = vsel %vm2181, %v2219, %v2216
    %v2221 = vrcp.pop %v2220
    %v2222 = vmul.f32 %v2188, %v2221
    %vm2223 = vcmp.ge.s32.totalorder %v2097, 0
    %v2224 = vsel %vm2223, 1, 0
    %v2225 = vlaneseq
    %v2226 = vshrl.u32 %v2225, 7
    %v2227 = vsub.s32 0, %v2226
    %v2228 = vrot.slane %v2224, %v2227
    %vm2229 = vcmp.eq.s32.totalorder %v2228, 1
    %v2230 = vsel %vm2229, %v2222, 0.0
    %2231 = vst [vmem:[%s17] sm:$0xff] %v2230
    // Predicated region
    $region90: #{run_fused.1} parent=1 // pred_check
      _
    $region91: #{run_fused.1} parent=1 // pred_check_branch
      %2233 = sbr.rel (0) target = $region93
    $region92: #{run_fused.1} parent=1 // pred_region
      _
    $region93: #{run_fused.1} parent=1 // pred_fallthru
      _
    // Predicated region
    $region94: #{run_fused.1} parent=1 // pred_check
      _
    $region95: #{run_fused.1} parent=1 // pred_check_branch
      %2235 = sbr.rel (0) target = $region97
    $region96: #{run_fused.1} parent=1 // pred_region
      _
    $region97: #{run_fused.1} parent=1 // pred_fallthru
      _
    %2236 = vsyncpa [#allocation3], 1
    %2237 = vsyncpa [#allocation7], 1
    %2238 = vsyncpa [#allocation10], 1
    %2239 = vsyncpa [#allocation4], 1

</llo_original>
